<compile_context>
chip_gen: v6e
topology: v6e:2x2x1
jax: 0.10.0
libtpu: 0.0.40
codegen_flags: <defaults>
</compile_context>

<pallas_src>
import functools

import jax
import jax.numpy as jnp
import numpy as np
from jax.experimental import pallas as pl
from jax.experimental.pallas import tpu as pltpu


def _generator_kernel(x_ref, wih_ref, whh_ref, blstm_ref,
                      wfc_ref, bfc_ref,
                      w1a_ref, b1a_ref, w1b_ref, b1b_ref,
                      w1c_ref, b1c_ref, w1d_ref, b1d_ref,
                      out_ref, *, mm_dtype):
    # x_ref is time-major: (S, Bt, D_in)
    x = x_ref[...]
    S, Bt, D_in = x.shape
    H = whh_ref.shape[0]
    G = 4 * H

    wih = wih_ref[...]            # (D_in, 4H), cols i|f|o|g (i/f/o scaled by 0.5)
    whh = whh_ref[...]            # (H, 4H)
    b_lstm = blstm_ref[...]       # (1, 4H), same scaling

    # ---- hoisted input projection: one (S*Bt, D_in) x (D_in, 4H) matmul ----
    xw = jnp.dot(x.reshape(S * Bt, D_in).astype(mm_dtype), wih,
                 preferred_element_type=jnp.float32) + b_lstm
    xw = xw.reshape(S, Bt, G)

    # sigmoid(z) = 0.5*tanh(z/2) + 0.5 ; g-gate stays plain tanh.
    # (i/f/o columns were pre-scaled by 0.5, so one tanh + affine covers all.)
    lane = jax.lax.broadcasted_iota(jnp.int32, (1, G), 1)
    gate_mult = jnp.broadcast_to(
        jnp.where(lane < 3 * H, 0.5, 1.0).astype(jnp.float32), (Bt, G))
    gate_add = jnp.broadcast_to(
        jnp.where(lane < 3 * H, 0.5, 0.0).astype(jnp.float32), (Bt, G))

    # ---- LSTM recurrence: fully unrolled, h/c register-resident -------------
    h = jnp.zeros((Bt, H), jnp.float32)
    c = jnp.zeros((Bt, H), jnp.float32)
    hs_list = []
    for t in range(S):                                    # S small & static
        gates = xw[t] + jnp.dot(h.astype(mm_dtype), whh,
                                preferred_element_type=jnp.float32)
        act = jnp.tanh(gates) * gate_mult + gate_add      # one EUP push / step
        i_g = act[:, 0:H]
        f_g = act[:, H:2 * H]
        o_g = act[:, 2 * H:3 * H]
        g_g = act[:, 3 * H:4 * H]
        c = f_g * c + i_g * g_g
        h = o_g * jnp.tanh(c)
        hs_list.append(h)

    # ---- out3 = tanh(fc_lstm(lstm_out)) : one batched matmul over S*Bt ------
    hs2d = jnp.concatenate(hs_list, axis=0)               # (S*Bt, H), time-major
    in3 = wfc_ref.shape[1]
    out3 = jnp.tanh(jnp.dot(hs2d.astype(mm_dtype), wfc_ref[...],
                            preferred_element_type=jnp.float32) + bfc_ref[...])
    out3 = out3.reshape(S, Bt, in3)

    # ---- MLP branch on x[:, 0, 2:2+in2] (time-major: x[0, :, 2:2+in2]) ------
    in2 = w1a_ref.shape[0]
    x0 = x[0, :, 2:2 + in2]                               # (Bt, in2)
    a = jnp.tanh(jnp.dot(x0.astype(mm_dtype), w1a_ref[...],
                         preferred_element_type=jnp.float32) + b1a_ref[...])
    b = jnp.tanh(jnp.dot(a.astype(mm_dtype), w1b_ref[...],
                         preferred_element_type=jnp.float32) + b1b_ref[...])
    cc = jnp.tanh(jnp.dot(b.astype(mm_dtype), w1c_ref[...],
                          preferred_element_type=jnp.float32) + b1c_ref[...])
    out1 = jnp.tanh(jnp.dot(cc.astype(mm_dtype), w1d_ref[...],
                            preferred_element_type=jnp.float32) + b1d_ref[...])
    in1 = out1.shape[1]
    out1_rep = jnp.broadcast_to(out1[None, :, :], (S, Bt, in1))

    # ---- single lane-dense store (channels padded to 128) -------------------
    out2 = x[:, :, 0:2]
    out_dim = 2 + in1 + in3
    out_pad_dim = out_ref.shape[-1]
    pad = jnp.zeros((S, Bt, out_pad_dim - out_dim), jnp.float32)
    out_ref[...] = jnp.concatenate([out2, out1_rep, out3, pad], axis=-1)


def generator_st_forward(x, params, *, batch_tile=None, use_bf16=False,
                         vmem_limit_bytes=None):
    """x: (B, S, D_in) float32. params: pre-transposed weights in PyTorch gate
    order (i,f,g,o).

    batch_tile: rows per grid step; must be a multiple of 8. Default = whole
    batch rounded up to 8 (single grid step). Only split (e.g. for the second
    v7x TensorCore) when each tile keeps >= 8 rows, ideally >= 128.
    vmem_limit_bytes: set explicitly on v5e for large batch tiles (16 MiB
    scoped default there).
    use_bf16: bf16 matmul operands with f32 accumulation (gate/elementwise
    math stays f32)."""
    B, S, D_in = x.shape
    H = params["whh"].shape[0]
    in1 = params["w1d"].shape[1]
    in3 = params["wfc"].shape[1]
    out_dim = 2 + in1 + in3
    out_pad = pl.cdiv(out_dim, 128) * 128            # lane-dense output slab

    if batch_tile is None:
        bt = max(8, pl.cdiv(B, 8) * 8)               # whole batch, dense sublanes
    else:
        assert batch_tile % 8 == 0, "batch_tile must be a multiple of 8"
        bt = batch_tile
    Bp = pl.cdiv(B, bt) * bt
    n_tiles = Bp // bt

    mm_dtype = jnp.bfloat16 if use_bf16 else jnp.float32

    # Reorder gate columns (i,f,g,o) -> (i,f,o,g) and pre-scale the sigmoid
    # gates (i,f,o) by 0.5 so one full-width tanh + affine covers all gates.
    def reorder_scale(w):
        return jnp.concatenate(
            [0.5 * w[..., 0:H], 0.5 * w[..., H:2 * H],
             0.5 * w[..., 3 * H:4 * H], w[..., 2 * H:3 * H]], axis=-1)

    weights = [
        reorder_scale(params["wih"]).astype(mm_dtype),
        reorder_scale(params["whh"]).astype(mm_dtype),
        reorder_scale(params["blstm"]).astype(jnp.float32),
        params["wfc"].astype(mm_dtype), params["bfc"].astype(jnp.float32),
        params["w1a"].astype(mm_dtype), params["b1a"].astype(jnp.float32),
        params["w1b"].astype(mm_dtype), params["b1b"].astype(jnp.float32),
        params["w1c"].astype(mm_dtype), params["b1c"].astype(jnp.float32),
        params["w1d"].astype(mm_dtype), params["b1d"].astype(jnp.float32),
    ]

    # Pad batch to a multiple of the tile and go time-major (S, Bp, D_in) so
    # every per-step access in the recurrence is sublane-dense.
    x_p = x if Bp == B else jnp.pad(x, ((0, Bp - B), (0, 0), (0, 0)))
    x_t = jnp.transpose(x_p, (1, 0, 2))

    in_specs = [pl.BlockSpec((S, bt, D_in), lambda i: (0, i, 0))]
    for w in weights:
        in_specs.append(pl.BlockSpec(w.shape, lambda i, _n=w.ndim: (0,) * _n))
    out_specs = pl.BlockSpec((S, bt, out_pad), lambda i: (0, i, 0))

    kernel = functools.partial(_generator_kernel, mm_dtype=mm_dtype)

    out_t = pl.pallas_call(
        kernel,
        out_shape=jax.ShapeDtypeStruct((S, Bp, out_pad), jnp.float32),
        grid=(n_tiles,),
        in_specs=in_specs,
        out_specs=out_specs,
        compiler_params=pltpu.CompilerParams(
            dimension_semantics=("parallel",),
            vmem_limit_bytes=vmem_limit_bytes),
    )(x_t, *weights)

    # Back to batch-major, drop batch/channel padding.
    return jnp.transpose(out_t, (1, 0, 2))[:B, :, :out_dim]


# ---------------------------- pure-JAX reference ----------------------------
def generator_st_reference(x, params):
    B, S, _ = x.shape
    H = params["whh"].shape[0]

    def cell(carry, xt):
        h, c = carry
        g = xt @ params["wih"] + h @ params["whh"] + params["blstm"]
        i = jax.nn.sigmoid(g[:, :H])
        f = jax.nn.sigmoid(g[:, H:2 * H])
        gg = jnp.tanh(g[:, 2 * H:3 * H])
        o = jax.nn.sigmoid(g[:, 3 * H:])
        c = f * c + i * gg
        h = o * jnp.tanh(c)
        return (h, c), h

    h0 = jnp.zeros((B, H), jnp.float32)
    (_, _), hs = jax.lax.scan(cell, (h0, h0), jnp.swapaxes(x, 0, 1))
    lstm_out = jnp.swapaxes(hs, 0, 1)                          # (B, S, H)
    out3 = jnp.tanh(lstm_out @ params["wfc"] + params["bfc"])  # (B, S, in3)

    in2 = params["w1a"].shape[0]
    x0 = x[:, 0, 2:2 + in2]
    o1 = jnp.tanh(x0 @ params["w1a"] + params["b1a"])
    o1 = jnp.tanh(o1 @ params["w1b"] + params["b1b"])
    o1 = jnp.tanh(o1 @ params["w1c"] + params["b1c"])
    o1 = jnp.tanh(o1 @ params["w1d"] + params["b1d"])          # (B, in1)
    o1 = jnp.broadcast_to(o1[:, None, :], (B, S, o1.shape[-1]))

    out2 = x[:, :, 0:2]
    return jnp.concatenate([out2, o1, out3], axis=2)


def _init_params(key, in1, in2, in3, hidden1, hidden):
    d_in = in1 + in2 + in3

    def uni(k, shape, fan_in):
        bound = 1.0 / np.sqrt(fan_in)
        return jax.random.uniform(k, shape, jnp.float32, -bound, bound)

    ks = jax.random.split(key, 13)
    return {
        # LSTM (weights stored transposed: (in_features, 4H)); gate order ifgo
        "wih": uni(ks[0], (d_in, 4 * hidden), hidden),
        "whh": uni(ks[1], (hidden, 4 * hidden), hidden),
        "blstm": uni(ks[2], (1, 4 * hidden), hidden),          # b_ih + b_hh merged
        # fc_lstm: hidden -> in3
        "wfc": uni(ks[3], (hidden, in3), hidden),
        "bfc": uni(ks[4], (1, in3), hidden),
        # MLP branch
        "w1a": uni(ks[5], (in1, hidden1), in1),
        "b1a": uni(ks[6], (1, hidden1), in1),
        "w1b": uni(ks[7], (hidden1, 2 * hidden), hidden1),
        "b1b": uni(ks[8], (1, 2 * hidden), hidden1),
        "w1c": uni(ks[9], (2 * hidden, hidden1), 2 * hidden),
        "b1c": uni(ks[10], (1, hidden1), 2 * hidden),
        "w1d": uni(ks[11], (hidden1, in1), hidden1),
        "b1d": uni(ks[12], (1, in1), hidden1),
    }


if __name__ == "__main__":
    # Small shapes consistent with the module: input_size_1 == input_size_2
    # (required by the original code's fc1a usage).
    B, S = 2, 8
    in1, in2, in3 = 4, 4, 4
    hidden1, hidden = 16, 32
    d_in = in1 + in2 + in3

    key = jax.random.PRNGKey(0)
    kx, kp = jax.random.split(key)
    x = jax.random.normal(kx, (B, S, d_in), jnp.float32)
    params = _init_params(kp, in1, in2, in3, hidden1, hidden)

    ref = jax.block_until_ready(generator_st_reference(x, params))

    # f32 path (default): single grid step, padded to 8 batch rows internally.
    out = jax.block_until_ready(generator_st_forward(x, params))
    assert out.shape == (B, S, 2 + in1 + in3), out.shape
    np.testing.assert_allclose(np.asarray(out), np.asarray(ref),
                               rtol=2e-3, atol=2e-3)

    # bf16 matmul-operand path (f32 accumulation / gate math): looser tolerance.
    out_bf = jax.block_until_ready(
        generator_st_forward(x, params, use_bf16=True))
    np.testing.assert_allclose(np.asarray(out_bf), np.asarray(ref),
                               rtol=5e-2, atol=5e-2)

    print("KERNEL_OK")
</pallas_src>

<mosaic_0001>
module attributes {stable_mosaic.version = 11 : i64} {
  func.func @_generator_kernel(%arg0: i32, %arg1: memref<8x8x12xf32, #tpu.memory_space<vmem>>, %arg2: memref<12x128xf32, #tpu.memory_space<vmem>>, %arg3: memref<32x128xf32, #tpu.memory_space<vmem>>, %arg4: memref<1x128xf32, #tpu.memory_space<vmem>>, %arg5: memref<32x4xf32, #tpu.memory_space<vmem>>, %arg6: memref<1x4xf32, #tpu.memory_space<vmem>>, %arg7: memref<4x16xf32, #tpu.memory_space<vmem>>, %arg8: memref<1x16xf32, #tpu.memory_space<vmem>>, %arg9: memref<16x64xf32, #tpu.memory_space<vmem>>, %arg10: memref<1x64xf32, #tpu.memory_space<vmem>>, %arg11: memref<64x16xf32, #tpu.memory_space<vmem>>, %arg12: memref<1x16xf32, #tpu.memory_space<vmem>>, %arg13: memref<16x4xf32, #tpu.memory_space<vmem>>, %arg14: memref<1x4xf32, #tpu.memory_space<vmem>>, %arg15: memref<8x8x128xf32, #tpu.memory_space<vmem>>) attributes {dimension_semantics = [#tpu.dimension_semantics<parallel>], iteration_bounds = array<i64: 1>, scalar_prefetch = 0 : i64, scratch_operands = 0 : i64, tpu.core_type = #tpu.core_type<tc>, window_params = [{transform_indices = @transform_0, window_bounds = array<i64: 8, 8, 12>}, {pipeline_mode = #tpu.pipeline_mode<synchronous>, transform_indices = @transform_1, window_bounds = array<i64: 12, 128>}, {pipeline_mode = #tpu.pipeline_mode<synchronous>, transform_indices = @transform_2, window_bounds = array<i64: 32, 128>}, {pipeline_mode = #tpu.pipeline_mode<synchronous>, transform_indices = @transform_3, window_bounds = array<i64: 1, 128>}, {pipeline_mode = #tpu.pipeline_mode<synchronous>, transform_indices = @transform_4, window_bounds = array<i64: 32, 4>}, {pipeline_mode = #tpu.pipeline_mode<synchronous>, transform_indices = @transform_5, window_bounds = array<i64: 1, 4>}, {pipeline_mode = #tpu.pipeline_mode<synchronous>, transform_indices = @transform_6, window_bounds = array<i64: 4, 16>}, {pipeline_mode = #tpu.pipeline_mode<synchronous>, transform_indices = @transform_7, window_bounds = array<i64: 1, 16>}, {pipeline_mode = #tpu.pipeline_mode<synchronous>, transform_indices = @transform_8, window_bounds = array<i64: 16, 64>}, {pipeline_mode = #tpu.pipeline_mode<synchronous>, transform_indices = @transform_9, window_bounds = array<i64: 1, 64>}, {pipeline_mode = #tpu.pipeline_mode<synchronous>, transform_indices = @transform_10, window_bounds = array<i64: 64, 16>}, {pipeline_mode = #tpu.pipeline_mode<synchronous>, transform_indices = @transform_11, window_bounds = array<i64: 1, 16>}, {pipeline_mode = #tpu.pipeline_mode<synchronous>, transform_indices = @transform_12, window_bounds = array<i64: 16, 4>}, {pipeline_mode = #tpu.pipeline_mode<synchronous>, transform_indices = @transform_13, window_bounds = array<i64: 1, 4>}, {transform_indices = @transform_14, window_bounds = array<i64: 8, 8, 128>}]} {
    %c0 = arith.constant 0 : index
    %c0_0 = arith.constant 0 : index
    %c0_1 = arith.constant 0 : index
    %0 = vector.load %arg1[%c0, %c0_0, %c0_1] : memref<8x8x12xf32, #tpu.memory_space<vmem>>, vector<8x8x12xf32>
    %c0_2 = arith.constant 0 : index
    %c0_3 = arith.constant 0 : index
    %1 = vector.load %arg2[%c0_2, %c0_3] : memref<12x128xf32, #tpu.memory_space<vmem>>, vector<12x128xf32>
    %c0_4 = arith.constant 0 : index
    %c0_5 = arith.constant 0 : index
    %2 = vector.load %arg3[%c0_4, %c0_5] : memref<32x128xf32, #tpu.memory_space<vmem>>, vector<32x128xf32>
    %c0_6 = arith.constant 0 : index
    %c0_7 = arith.constant 0 : index
    %3 = vector.load %arg4[%c0_6, %c0_7] : memref<1x128xf32, #tpu.memory_space<vmem>>, vector<1x128xf32>
    %4 = vector.shape_cast %0 : vector<8x8x12xf32> to vector<64x12xf32>
    %cst = arith.constant dense<0.000000e+00> : vector<64x128xf32>
    %5 = tpu.matmul %4, %1, %cst {dimension_numbers = #tpu.dot_dimension_numbers<[1], [0], [0], [1], [0, 0, 1, 1], [], []>} : vector<64x12xf32>, vector<12x128xf32>, vector<64x128xf32> -> vector<64x128xf32>
    %6 = vector.broadcast %3 : vector<1x128xf32> to vector<64x128xf32>
    %7 = arith.addf %5, %6 : vector<64x128xf32>
    %8 = vector.shape_cast %7 : vector<64x128xf32> to vector<8x8x128xf32>
    %9 = tpu.iota {dimensions = array<i32: 1>} : vector<1x128xi32>
    %c96_i32 = arith.constant 96 : i32
    %10 = vector.broadcast %c96_i32 : i32 to vector<1x128xi32>
    %11 = arith.cmpi slt, %9, %10 : vector<1x128xi32>
    %cst_8 = arith.constant 5.000000e-01 : f32
    %cst_9 = arith.constant 1.000000e+00 : f32
    %12 = vector.broadcast %cst_8 : f32 to vector<1x128xf32>
    %13 = vector.broadcast %cst_9 : f32 to vector<1x128xf32>
    %14 = arith.select %11, %12, %13 : vector<1x128xi1>, vector<1x128xf32>
    %15 = vector.shape_cast %14 : vector<1x128xf32> to vector<1x128xf32>
    %16 = vector.broadcast %15 : vector<1x128xf32> to vector<8x128xf32>
    %c96_i32_10 = arith.constant 96 : i32
    %17 = vector.broadcast %c96_i32_10 : i32 to vector<1x128xi32>
    %18 = arith.cmpi slt, %9, %17 : vector<1x128xi32>
    %cst_11 = arith.constant 5.000000e-01 : f32
    %cst_12 = arith.constant 0.000000e+00 : f32
    %19 = vector.broadcast %cst_11 : f32 to vector<1x128xf32>
    %20 = vector.broadcast %cst_12 : f32 to vector<1x128xf32>
    %21 = arith.select %18, %19, %20 : vector<1x128xi1>, vector<1x128xf32>
    %22 = vector.shape_cast %21 : vector<1x128xf32> to vector<1x128xf32>
    %23 = vector.broadcast %22 : vector<1x128xf32> to vector<8x128xf32>
    %cst_13 = arith.constant 0.000000e+00 : f32
    %24 = vector.broadcast %cst_13 : f32 to vector<8x32xf32>
    %cst_14 = arith.constant 0.000000e+00 : f32
    %25 = vector.broadcast %cst_14 : f32 to vector<8x32xf32>
    %26 = vector.extract_strided_slice %8 {offsets = [0, 0, 0], sizes = [1, 8, 128], strides = [1, 1, 1]} : vector<8x8x128xf32> to vector<1x8x128xf32>
    %27 = vector.shape_cast %26 : vector<1x8x128xf32> to vector<8x128xf32>
    %cst_15 = arith.constant dense<0.000000e+00> : vector<8x128xf32>
    %28 = tpu.matmul %24, %2, %cst_15 {dimension_numbers = #tpu.dot_dimension_numbers<[1], [0], [0], [1], [0, 0, 1, 1], [], []>} : vector<8x32xf32>, vector<32x128xf32>, vector<8x128xf32> -> vector<8x128xf32>
    %29 = arith.addf %27, %28 : vector<8x128xf32>
    %30 = math.tanh %29 : vector<8x128xf32>
    %31 = arith.mulf %30, %16 : vector<8x128xf32>
    %32 = arith.addf %31, %23 : vector<8x128xf32>
    %33 = vector.extract_strided_slice %32 {offsets = [0, 0], sizes = [8, 32], strides = [1, 1]} : vector<8x128xf32> to vector<8x32xf32>
    %34 = vector.extract_strided_slice %32 {offsets = [0, 32], sizes = [8, 32], strides = [1, 1]} : vector<8x128xf32> to vector<8x32xf32>
    %35 = vector.extract_strided_slice %32 {offsets = [0, 64], sizes = [8, 32], strides = [1, 1]} : vector<8x128xf32> to vector<8x32xf32>
    %36 = vector.extract_strided_slice %32 {offsets = [0, 96], sizes = [8, 32], strides = [1, 1]} : vector<8x128xf32> to vector<8x32xf32>
    %37 = arith.mulf %34, %25 : vector<8x32xf32>
    %38 = arith.mulf %33, %36 : vector<8x32xf32>
    %39 = arith.addf %37, %38 : vector<8x32xf32>
    %40 = math.tanh %39 : vector<8x32xf32>
    %41 = arith.mulf %35, %40 : vector<8x32xf32>
    %42 = vector.extract_strided_slice %8 {offsets = [1, 0, 0], sizes = [1, 8, 128], strides = [1, 1, 1]} : vector<8x8x128xf32> to vector<1x8x128xf32>
    %43 = vector.shape_cast %42 : vector<1x8x128xf32> to vector<8x128xf32>
    %cst_16 = arith.constant dense<0.000000e+00> : vector<8x128xf32>
    %44 = tpu.matmul %41, %2, %cst_16 {dimension_numbers = #tpu.dot_dimension_numbers<[1], [0], [0], [1], [0, 0, 1, 1], [], []>} : vector<8x32xf32>, vector<32x128xf32>, vector<8x128xf32> -> vector<8x128xf32>
    %45 = arith.addf %43, %44 : vector<8x128xf32>
    %46 = math.tanh %45 : vector<8x128xf32>
    %47 = arith.mulf %46, %16 : vector<8x128xf32>
    %48 = arith.addf %47, %23 : vector<8x128xf32>
    %49 = vector.extract_strided_slice %48 {offsets = [0, 0], sizes = [8, 32], strides = [1, 1]} : vector<8x128xf32> to vector<8x32xf32>
    %50 = vector.extract_strided_slice %48 {offsets = [0, 32], sizes = [8, 32], strides = [1, 1]} : vector<8x128xf32> to vector<8x32xf32>
    %51 = vector.extract_strided_slice %48 {offsets = [0, 64], sizes = [8, 32], strides = [1, 1]} : vector<8x128xf32> to vector<8x32xf32>
    %52 = vector.extract_strided_slice %48 {offsets = [0, 96], sizes = [8, 32], strides = [1, 1]} : vector<8x128xf32> to vector<8x32xf32>
    %53 = arith.mulf %50, %39 : vector<8x32xf32>
    %54 = arith.mulf %49, %52 : vector<8x32xf32>
    %55 = arith.addf %53, %54 : vector<8x32xf32>
    %56 = math.tanh %55 : vector<8x32xf32>
    %57 = arith.mulf %51, %56 : vector<8x32xf32>
    %58 = vector.extract_strided_slice %8 {offsets = [2, 0, 0], sizes = [1, 8, 128], strides = [1, 1, 1]} : vector<8x8x128xf32> to vector<1x8x128xf32>
    %59 = vector.shape_cast %58 : vector<1x8x128xf32> to vector<8x128xf32>
    %cst_17 = arith.constant dense<0.000000e+00> : vector<8x128xf32>
    %60 = tpu.matmul %57, %2, %cst_17 {dimension_numbers = #tpu.dot_dimension_numbers<[1], [0], [0], [1], [0, 0, 1, 1], [], []>} : vector<8x32xf32>, vector<32x128xf32>, vector<8x128xf32> -> vector<8x128xf32>
    %61 = arith.addf %59, %60 : vector<8x128xf32>
    %62 = math.tanh %61 : vector<8x128xf32>
    %63 = arith.mulf %62, %16 : vector<8x128xf32>
    %64 = arith.addf %63, %23 : vector<8x128xf32>
    %65 = vector.extract_strided_slice %64 {offsets = [0, 0], sizes = [8, 32], strides = [1, 1]} : vector<8x128xf32> to vector<8x32xf32>
    %66 = vector.extract_strided_slice %64 {offsets = [0, 32], sizes = [8, 32], strides = [1, 1]} : vector<8x128xf32> to vector<8x32xf32>
    %67 = vector.extract_strided_slice %64 {offsets = [0, 64], sizes = [8, 32], strides = [1, 1]} : vector<8x128xf32> to vector<8x32xf32>
    %68 = vector.extract_strided_slice %64 {offsets = [0, 96], sizes = [8, 32], strides = [1, 1]} : vector<8x128xf32> to vector<8x32xf32>
    %69 = arith.mulf %66, %55 : vector<8x32xf32>
    %70 = arith.mulf %65, %68 : vector<8x32xf32>
    %71 = arith.addf %69, %70 : vector<8x32xf32>
    %72 = math.tanh %71 : vector<8x32xf32>
    %73 = arith.mulf %67, %72 : vector<8x32xf32>
    %74 = vector.extract_strided_slice %8 {offsets = [3, 0, 0], sizes = [1, 8, 128], strides = [1, 1, 1]} : vector<8x8x128xf32> to vector<1x8x128xf32>
    %75 = vector.shape_cast %74 : vector<1x8x128xf32> to vector<8x128xf32>
    %cst_18 = arith.constant dense<0.000000e+00> : vector<8x128xf32>
    %76 = tpu.matmul %73, %2, %cst_18 {dimension_numbers = #tpu.dot_dimension_numbers<[1], [0], [0], [1], [0, 0, 1, 1], [], []>} : vector<8x32xf32>, vector<32x128xf32>, vector<8x128xf32> -> vector<8x128xf32>
    %77 = arith.addf %75, %76 : vector<8x128xf32>
    %78 = math.tanh %77 : vector<8x128xf32>
    %79 = arith.mulf %78, %16 : vector<8x128xf32>
    %80 = arith.addf %79, %23 : vector<8x128xf32>
    %81 = vector.extract_strided_slice %80 {offsets = [0, 0], sizes = [8, 32], strides = [1, 1]} : vector<8x128xf32> to vector<8x32xf32>
    %82 = vector.extract_strided_slice %80 {offsets = [0, 32], sizes = [8, 32], strides = [1, 1]} : vector<8x128xf32> to vector<8x32xf32>
    %83 = vector.extract_strided_slice %80 {offsets = [0, 64], sizes = [8, 32], strides = [1, 1]} : vector<8x128xf32> to vector<8x32xf32>
    %84 = vector.extract_strided_slice %80 {offsets = [0, 96], sizes = [8, 32], strides = [1, 1]} : vector<8x128xf32> to vector<8x32xf32>
    %85 = arith.mulf %82, %71 : vector<8x32xf32>
    %86 = arith.mulf %81, %84 : vector<8x32xf32>
    %87 = arith.addf %85, %86 : vector<8x32xf32>
    %88 = math.tanh %87 : vector<8x32xf32>
    %89 = arith.mulf %83, %88 : vector<8x32xf32>
    %90 = vector.extract_strided_slice %8 {offsets = [4, 0, 0], sizes = [1, 8, 128], strides = [1, 1, 1]} : vector<8x8x128xf32> to vector<1x8x128xf32>
    %91 = vector.shape_cast %90 : vector<1x8x128xf32> to vector<8x128xf32>
    %cst_19 = arith.constant dense<0.000000e+00> : vector<8x128xf32>
    %92 = tpu.matmul %89, %2, %cst_19 {dimension_numbers = #tpu.dot_dimension_numbers<[1], [0], [0], [1], [0, 0, 1, 1], [], []>} : vector<8x32xf32>, vector<32x128xf32>, vector<8x128xf32> -> vector<8x128xf32>
    %93 = arith.addf %91, %92 : vector<8x128xf32>
    %94 = math.tanh %93 : vector<8x128xf32>
    %95 = arith.mulf %94, %16 : vector<8x128xf32>
    %96 = arith.addf %95, %23 : vector<8x128xf32>
    %97 = vector.extract_strided_slice %96 {offsets = [0, 0], sizes = [8, 32], strides = [1, 1]} : vector<8x128xf32> to vector<8x32xf32>
    %98 = vector.extract_strided_slice %96 {offsets = [0, 32], sizes = [8, 32], strides = [1, 1]} : vector<8x128xf32> to vector<8x32xf32>
    %99 = vector.extract_strided_slice %96 {offsets = [0, 64], sizes = [8, 32], strides = [1, 1]} : vector<8x128xf32> to vector<8x32xf32>
    %100 = vector.extract_strided_slice %96 {offsets = [0, 96], sizes = [8, 32], strides = [1, 1]} : vector<8x128xf32> to vector<8x32xf32>
    %101 = arith.mulf %98, %87 : vector<8x32xf32>
    %102 = arith.mulf %97, %100 : vector<8x32xf32>
    %103 = arith.addf %101, %102 : vector<8x32xf32>
    %104 = math.tanh %103 : vector<8x32xf32>
    %105 = arith.mulf %99, %104 : vector<8x32xf32>
    %106 = vector.extract_strided_slice %8 {offsets = [5, 0, 0], sizes = [1, 8, 128], strides = [1, 1, 1]} : vector<8x8x128xf32> to vector<1x8x128xf32>
    %107 = vector.shape_cast %106 : vector<1x8x128xf32> to vector<8x128xf32>
    %cst_20 = arith.constant dense<0.000000e+00> : vector<8x128xf32>
    %108 = tpu.matmul %105, %2, %cst_20 {dimension_numbers = #tpu.dot_dimension_numbers<[1], [0], [0], [1], [0, 0, 1, 1], [], []>} : vector<8x32xf32>, vector<32x128xf32>, vector<8x128xf32> -> vector<8x128xf32>
    %109 = arith.addf %107, %108 : vector<8x128xf32>
    %110 = math.tanh %109 : vector<8x128xf32>
    %111 = arith.mulf %110, %16 : vector<8x128xf32>
    %112 = arith.addf %111, %23 : vector<8x128xf32>
    %113 = vector.extract_strided_slice %112 {offsets = [0, 0], sizes = [8, 32], strides = [1, 1]} : vector<8x128xf32> to vector<8x32xf32>
    %114 = vector.extract_strided_slice %112 {offsets = [0, 32], sizes = [8, 32], strides = [1, 1]} : vector<8x128xf32> to vector<8x32xf32>
    %115 = vector.extract_strided_slice %112 {offsets = [0, 64], sizes = [8, 32], strides = [1, 1]} : vector<8x128xf32> to vector<8x32xf32>
    %116 = vector.extract_strided_slice %112 {offsets = [0, 96], sizes = [8, 32], strides = [1, 1]} : vector<8x128xf32> to vector<8x32xf32>
    %117 = arith.mulf %114, %103 : vector<8x32xf32>
    %118 = arith.mulf %113, %116 : vector<8x32xf32>
    %119 = arith.addf %117, %118 : vector<8x32xf32>
    %120 = math.tanh %119 : vector<8x32xf32>
    %121 = arith.mulf %115, %120 : vector<8x32xf32>
    %122 = vector.extract_strided_slice %8 {offsets = [6, 0, 0], sizes = [1, 8, 128], strides = [1, 1, 1]} : vector<8x8x128xf32> to vector<1x8x128xf32>
    %123 = vector.shape_cast %122 : vector<1x8x128xf32> to vector<8x128xf32>
    %cst_21 = arith.constant dense<0.000000e+00> : vector<8x128xf32>
    %124 = tpu.matmul %121, %2, %cst_21 {dimension_numbers = #tpu.dot_dimension_numbers<[1], [0], [0], [1], [0, 0, 1, 1], [], []>} : vector<8x32xf32>, vector<32x128xf32>, vector<8x128xf32> -> vector<8x128xf32>
    %125 = arith.addf %123, %124 : vector<8x128xf32>
    %126 = math.tanh %125 : vector<8x128xf32>
    %127 = arith.mulf %126, %16 : vector<8x128xf32>
    %128 = arith.addf %127, %23 : vector<8x128xf32>
    %129 = vector.extract_strided_slice %128 {offsets = [0, 0], sizes = [8, 32], strides = [1, 1]} : vector<8x128xf32> to vector<8x32xf32>
    %130 = vector.extract_strided_slice %128 {offsets = [0, 32], sizes = [8, 32], strides = [1, 1]} : vector<8x128xf32> to vector<8x32xf32>
    %131 = vector.extract_strided_slice %128 {offsets = [0, 64], sizes = [8, 32], strides = [1, 1]} : vector<8x128xf32> to vector<8x32xf32>
    %132 = vector.extract_strided_slice %128 {offsets = [0, 96], sizes = [8, 32], strides = [1, 1]} : vector<8x128xf32> to vector<8x32xf32>
    %133 = arith.mulf %130, %119 : vector<8x32xf32>
    %134 = arith.mulf %129, %132 : vector<8x32xf32>
    %135 = arith.addf %133, %134 : vector<8x32xf32>
    %136 = math.tanh %135 : vector<8x32xf32>
    %137 = arith.mulf %131, %136 : vector<8x32xf32>
    %138 = vector.extract_strided_slice %8 {offsets = [7, 0, 0], sizes = [1, 8, 128], strides = [1, 1, 1]} : vector<8x8x128xf32> to vector<1x8x128xf32>
    %139 = vector.shape_cast %138 : vector<1x8x128xf32> to vector<8x128xf32>
    %cst_22 = arith.constant dense<0.000000e+00> : vector<8x128xf32>
    %140 = tpu.matmul %137, %2, %cst_22 {dimension_numbers = #tpu.dot_dimension_numbers<[1], [0], [0], [1], [0, 0, 1, 1], [], []>} : vector<8x32xf32>, vector<32x128xf32>, vector<8x128xf32> -> vector<8x128xf32>
    %141 = arith.addf %139, %140 : vector<8x128xf32>
    %142 = math.tanh %141 : vector<8x128xf32>
    %143 = arith.mulf %142, %16 : vector<8x128xf32>
    %144 = arith.addf %143, %23 : vector<8x128xf32>
    %145 = vector.extract_strided_slice %144 {offsets = [0, 0], sizes = [8, 32], strides = [1, 1]} : vector<8x128xf32> to vector<8x32xf32>
    %146 = vector.extract_strided_slice %144 {offsets = [0, 32], sizes = [8, 32], strides = [1, 1]} : vector<8x128xf32> to vector<8x32xf32>
    %147 = vector.extract_strided_slice %144 {offsets = [0, 64], sizes = [8, 32], strides = [1, 1]} : vector<8x128xf32> to vector<8x32xf32>
    %148 = vector.extract_strided_slice %144 {offsets = [0, 96], sizes = [8, 32], strides = [1, 1]} : vector<8x128xf32> to vector<8x32xf32>
    %149 = arith.mulf %146, %135 : vector<8x32xf32>
    %150 = arith.mulf %145, %148 : vector<8x32xf32>
    %151 = arith.addf %149, %150 : vector<8x32xf32>
    %152 = math.tanh %151 : vector<8x32xf32>
    %153 = arith.mulf %147, %152 : vector<8x32xf32>
    %154 = tpu.concatenate %41, %57, %73, %89, %105, %121, %137, %153 in 0 : vector<8x32xf32>, vector<8x32xf32>, vector<8x32xf32>, vector<8x32xf32>, vector<8x32xf32>, vector<8x32xf32>, vector<8x32xf32>, vector<8x32xf32> -> vector<64x32xf32>
    %c0_23 = arith.constant 0 : index
    %c0_24 = arith.constant 0 : index
    %155 = vector.load %arg5[%c0_23, %c0_24] : memref<32x4xf32, #tpu.memory_space<vmem>>, vector<32x4xf32>
    %cst_25 = arith.constant dense<0.000000e+00> : vector<64x4xf32>
    %156 = tpu.matmul %154, %155, %cst_25 {dimension_numbers = #tpu.dot_dimension_numbers<[1], [0], [0], [1], [0, 0, 1, 1], [], []>} : vector<64x32xf32>, vector<32x4xf32>, vector<64x4xf32> -> vector<64x4xf32>
    %c0_26 = arith.constant 0 : index
    %c0_27 = arith.constant 0 : index
    %157 = vector.load %arg6[%c0_26, %c0_27] : memref<1x4xf32, #tpu.memory_space<vmem>>, vector<1x4xf32>
    %158 = vector.broadcast %157 : vector<1x4xf32> to vector<64x4xf32>
    %159 = arith.addf %156, %158 : vector<64x4xf32>
    %160 = math.tanh %159 : vector<64x4xf32>
    %161 = vector.shape_cast %160 : vector<64x4xf32> to vector<8x8x4xf32>
    %162 = vector.extract_strided_slice %0 {offsets = [0, 0, 2], sizes = [1, 8, 4], strides = [1, 1, 1]} : vector<8x8x12xf32> to vector<1x8x4xf32>
    %163 = vector.shape_cast %162 : vector<1x8x4xf32> to vector<8x4xf32>
    %c0_28 = arith.constant 0 : index
    %c0_29 = arith.constant 0 : index
    %164 = vector.load %arg7[%c0_28, %c0_29] : memref<4x16xf32, #tpu.memory_space<vmem>>, vector<4x16xf32>
    %cst_30 = arith.constant dense<0.000000e+00> : vector<8x16xf32>
    %165 = tpu.matmul %163, %164, %cst_30 {dimension_numbers = #tpu.dot_dimension_numbers<[1], [0], [0], [1], [0, 0, 1, 1], [], []>} : vector<8x4xf32>, vector<4x16xf32>, vector<8x16xf32> -> vector<8x16xf32>
    %c0_31 = arith.constant 0 : index
    %c0_32 = arith.constant 0 : index
    %166 = vector.load %arg8[%c0_31, %c0_32] : memref<1x16xf32, #tpu.memory_space<vmem>>, vector<1x16xf32>
    %167 = vector.broadcast %166 : vector<1x16xf32> to vector<8x16xf32>
    %168 = arith.addf %165, %167 : vector<8x16xf32>
    %169 = math.tanh %168 : vector<8x16xf32>
    %c0_33 = arith.constant 0 : index
    %c0_34 = arith.constant 0 : index
    %170 = vector.load %arg9[%c0_33, %c0_34] : memref<16x64xf32, #tpu.memory_space<vmem>>, vector<16x64xf32>
    %cst_35 = arith.constant dense<0.000000e+00> : vector<8x64xf32>
    %171 = tpu.matmul %169, %170, %cst_35 {dimension_numbers = #tpu.dot_dimension_numbers<[1], [0], [0], [1], [0, 0, 1, 1], [], []>} : vector<8x16xf32>, vector<16x64xf32>, vector<8x64xf32> -> vector<8x64xf32>
    %c0_36 = arith.constant 0 : index
    %c0_37 = arith.constant 0 : index
    %172 = vector.load %arg10[%c0_36, %c0_37] : memref<1x64xf32, #tpu.memory_space<vmem>>, vector<1x64xf32>
    %173 = vector.broadcast %172 : vector<1x64xf32> to vector<8x64xf32>
    %174 = arith.addf %171, %173 : vector<8x64xf32>
    %175 = math.tanh %174 : vector<8x64xf32>
    %c0_38 = arith.constant 0 : index
    %c0_39 = arith.constant 0 : index
    %176 = vector.load %arg11[%c0_38, %c0_39] : memref<64x16xf32, #tpu.memory_space<vmem>>, vector<64x16xf32>
    %cst_40 = arith.constant dense<0.000000e+00> : vector<8x16xf32>
    %177 = tpu.matmul %175, %176, %cst_40 {dimension_numbers = #tpu.dot_dimension_numbers<[1], [0], [0], [1], [0, 0, 1, 1], [], []>} : vector<8x64xf32>, vector<64x16xf32>, vector<8x16xf32> -> vector<8x16xf32>
    %c0_41 = arith.constant 0 : index
    %c0_42 = arith.constant 0 : index
    %178 = vector.load %arg12[%c0_41, %c0_42] : memref<1x16xf32, #tpu.memory_space<vmem>>, vector<1x16xf32>
    %179 = vector.broadcast %178 : vector<1x16xf32> to vector<8x16xf32>
    %180 = arith.addf %177, %179 : vector<8x16xf32>
    %181 = math.tanh %180 : vector<8x16xf32>
    %c0_43 = arith.constant 0 : index
    %c0_44 = arith.constant 0 : index
    %182 = vector.load %arg13[%c0_43, %c0_44] : memref<16x4xf32, #tpu.memory_space<vmem>>, vector<16x4xf32>
    %cst_45 = arith.constant dense<0.000000e+00> : vector<8x4xf32>
    %183 = tpu.matmul %181, %182, %cst_45 {dimension_numbers = #tpu.dot_dimension_numbers<[1], [0], [0], [1], [0, 0, 1, 1], [], []>} : vector<8x16xf32>, vector<16x4xf32>, vector<8x4xf32> -> vector<8x4xf32>
    %c0_46 = arith.constant 0 : index
    %c0_47 = arith.constant 0 : index
    %184 = vector.load %arg14[%c0_46, %c0_47] : memref<1x4xf32, #tpu.memory_space<vmem>>, vector<1x4xf32>
    %185 = vector.broadcast %184 : vector<1x4xf32> to vector<8x4xf32>
    %186 = arith.addf %183, %185 : vector<8x4xf32>
    %187 = math.tanh %186 : vector<8x4xf32>
    %188 = vector.shape_cast %187 : vector<8x4xf32> to vector<1x8x4xf32>
    %189 = vector.shape_cast %188 : vector<1x8x4xf32> to vector<1x8x4xf32>
    %190 = vector.broadcast %189 : vector<1x8x4xf32> to vector<8x8x4xf32>
    %191 = vector.extract_strided_slice %0 {offsets = [0, 0, 0], sizes = [8, 8, 2], strides = [1, 1, 1]} : vector<8x8x12xf32> to vector<8x8x2xf32>
    %cst_48 = arith.constant 0.000000e+00 : f32
    %192 = vector.broadcast %cst_48 : f32 to vector<8x8x118xf32>
    %193 = tpu.concatenate %191, %190, %161, %192 in 2 : vector<8x8x2xf32>, vector<8x8x4xf32>, vector<8x8x4xf32>, vector<8x8x118xf32> -> vector<8x8x128xf32>
    %c0_49 = arith.constant 0 : index
    %c0_50 = arith.constant 0 : index
    %c0_51 = arith.constant 0 : index
    %194 = vector.load %arg15[%c0_49, %c0_50, %c0_51] : memref<8x8x128xf32, #tpu.memory_space<vmem>>, vector<8x8x128xf32>
    tpu.vector_store %arg15[%c0_49, %c0_50, %c0_51], %193 {strides = array<i32>} : memref<8x8x128xf32, #tpu.memory_space<vmem>>, vector<8x8x128xf32>,
    return
  }
  func.func @transform_0(%arg0: i32) -> (i32, i32, i32) {
    %c0_i32 = arith.constant 0 : i32
    %c0_i32_0 = arith.constant 0 : i32
    %c0_i32_1 = arith.constant 0 : i32
    return %c0_i32, %arg0, %c0_i32_0 : i32, i32, i32
  }
  func.func @transform_1(%arg0: i32) -> (i32, i32) {
    %c0_i32 = arith.constant 0 : i32
    %c0_i32_0 = arith.constant 0 : i32
    %c0_i32_1 = arith.constant 0 : i32
    return %c0_i32, %c0_i32_0 : i32, i32
  }
  func.func @transform_2(%arg0: i32) -> (i32, i32) {
    %c0_i32 = arith.constant 0 : i32
    %c0_i32_0 = arith.constant 0 : i32
    %c0_i32_1 = arith.constant 0 : i32
    return %c0_i32, %c0_i32_0 : i32, i32
  }
  func.func @transform_3(%arg0: i32) -> (i32, i32) {
    %c0_i32 = arith.constant 0 : i32
    %c0_i32_0 = arith.constant 0 : i32
    %c0_i32_1 = arith.constant 0 : i32
    return %c0_i32, %c0_i32_0 : i32, i32
  }
  func.func @transform_4(%arg0: i32) -> (i32, i32) {
    %c0_i32 = arith.constant 0 : i32
    %c0_i32_0 = arith.constant 0 : i32
    %c0_i32_1 = arith.constant 0 : i32
    return %c0_i32, %c0_i32_0 : i32, i32
  }
  func.func @transform_5(%arg0: i32) -> (i32, i32) {
    %c0_i32 = arith.constant 0 : i32
    %c0_i32_0 = arith.constant 0 : i32
    %c0_i32_1 = arith.constant 0 : i32
    return %c0_i32, %c0_i32_0 : i32, i32
  }
  func.func @transform_6(%arg0: i32) -> (i32, i32) {
    %c0_i32 = arith.constant 0 : i32
    %c0_i32_0 = arith.constant 0 : i32
    %c0_i32_1 = arith.constant 0 : i32
    return %c0_i32, %c0_i32_0 : i32, i32
  }
  func.func @transform_7(%arg0: i32) -> (i32, i32) {
    %c0_i32 = arith.constant 0 : i32
    %c0_i32_0 = arith.constant 0 : i32
    %c0_i32_1 = arith.constant 0 : i32
    return %c0_i32, %c0_i32_0 : i32, i32
  }
  func.func @transform_8(%arg0: i32) -> (i32, i32) {
    %c0_i32 = arith.constant 0 : i32
    %c0_i32_0 = arith.constant 0 : i32
    %c0_i32_1 = arith.constant 0 : i32
    return %c0_i32, %c0_i32_0 : i32, i32
  }
  func.func @transform_9(%arg0: i32) -> (i32, i32) {
    %c0_i32 = arith.constant 0 : i32
    %c0_i32_0 = arith.constant 0 : i32
    %c0_i32_1 = arith.constant 0 : i32
    return %c0_i32, %c0_i32_0 : i32, i32
  }
  func.func @transform_10(%arg0: i32) -> (i32, i32) {
    %c0_i32 = arith.constant 0 : i32
    %c0_i32_0 = arith.constant 0 : i32
    %c0_i32_1 = arith.constant 0 : i32
    return %c0_i32, %c0_i32_0 : i32, i32
  }
  func.func @transform_11(%arg0: i32) -> (i32, i32) {
    %c0_i32 = arith.constant 0 : i32
    %c0_i32_0 = arith.constant 0 : i32
    %c0_i32_1 = arith.constant 0 : i32
    return %c0_i32, %c0_i32_0 : i32, i32
  }
  func.func @transform_12(%arg0: i32) -> (i32, i32) {
    %c0_i32 = arith.constant 0 : i32
    %c0_i32_0 = arith.constant 0 : i32
    %c0_i32_1 = arith.constant 0 : i32
    return %c0_i32, %c0_i32_0 : i32, i32
  }
  func.func @transform_13(%arg0: i32) -> (i32, i32) {
    %c0_i32 = arith.constant 0 : i32
    %c0_i32_0 = arith.constant 0 : i32
    %c0_i32_1 = arith.constant 0 : i32
    return %c0_i32, %c0_i32_0 : i32, i32
  }
  func.func @transform_14(%arg0: i32) -> (i32, i32, i32) {
    %c0_i32 = arith.constant 0 : i32
    %c0_i32_0 = arith.constant 0 : i32
    %c0_i32_1 = arith.constant 0 : i32
    return %c0_i32, %arg0, %c0_i32_0 : i32, i32, i32
  }
}

</mosaic_0001>

<llo_original>
// kernel: tpu_custom_call.1
$region0: #{tpu_custom_call.1}
  #allocation0 [shape = 'u32[]', space=smem, size = 0x4, offset = 0x4, fixed_abs, tag = 'smem constant byte address 0x4 - core index']
  #allocation1 [shape = 'u32[144,128]{1,0:T(1,128)}', space=vmem, size = 0x12000, scoped, tag = 'internal scratch']
  %s0 = inlined_call_operand.vmem [shape: f32[8,8,12], index: 0, kind: input, shape index: {}]
  %s1 = inlined_call_operand.vmem [shape: f32[12,128], index: 1, kind: input, shape index: {}]
  %s2 = inlined_call_operand.vmem [shape: f32[32,128], index: 2, kind: input, shape index: {}]
  %s3 = inlined_call_operand.hbm [shape: f32[1,128], index: 3, kind: input, shape index: {}]
  %s4 = inlined_call_operand.vmem [shape: f32[32,4], index: 4, kind: input, shape index: {}]
  %s5 = inlined_call_operand.hbm [shape: f32[1,4], index: 5, kind: input, shape index: {}]
  %s6 = inlined_call_operand.hbm [shape: f32[4,16], index: 6, kind: input, shape index: {}]
  %s7 = inlined_call_operand.hbm [shape: f32[1,16], index: 7, kind: input, shape index: {}]
  %s8 = inlined_call_operand.vmem [shape: f32[16,64], index: 8, kind: input, shape index: {}]
  %s9 = inlined_call_operand.vmem [shape: f32[1,64], index: 9, kind: input, shape index: {}]
  %s10 = inlined_call_operand.vmem [shape: f32[64,16], index: 10, kind: input, shape index: {}]
  %s11 = inlined_call_operand.vmem [shape: f32[1,16], index: 11, kind: input, shape index: {}]
  %s12 = inlined_call_operand.vmem [shape: f32[16,4], index: 12, kind: input, shape index: {}]
  %s13 = inlined_call_operand.vmem [shape: f32[1,4], index: 13, kind: input, shape index: {}]
  %s14 = inlined_call_operand.hbm [shape: f32[8,8,128], index: 14, kind: output, shape index: {}]
  %s15 = sld [smem:[#allocation0]]
  $region82: #{tpu_custom_call.1} parent=0
    _
  %s17 = ssub.s32 1, %s15
  %s18 = scalar_select 0, %s17, %s15
  $region1: #{tpu_custom_call.1} parent=0
    #allocation2 [shape = 'u8[512]{0}', space=vmem, size = 0x400, scoped, tag = 'input window, operand 3, single buffered']
    #allocation3 [shape = 's32[1]{0}', space=sflag, size = 0x4, scoped, tag = 'scoped memory for tpu_custom_call.1']
    #allocation4 [shape = 's32[1]{0}', space=sflag, size = 0x4, scoped, tag = 'scoped memory for tpu_custom_call.1']
    #allocation5 [shape = 'u8[512]{0}', space=vmem, size = 0x400, scoped, tag = 'input window, operand 5, single buffered']
    #allocation6 [shape = 's32[1]{0}', space=sflag, size = 0x4, scoped, tag = 'scoped memory for tpu_custom_call.1']
    #allocation7 [shape = 'u8[2048]{0}', space=vmem, size = 0x800, scoped, tag = 'input window, operand 6, single buffered']
    #allocation8 [shape = 'u8[512]{0}', space=vmem, size = 0x400, scoped, tag = 'input window, operand 7, single buffered']
    #allocation9 [shape = 's32[1]{0}', space=sflag, size = 0x4, scoped, tag = 'scoped memory for tpu_custom_call.1']
    #allocation10 [shape = 'u8[32768]{0}', space=vmem, size = 0x8000, scoped, tag = 'output window, operand 0, single buffered']
    %19 = vsyncpa [#allocation3], 0
    %20 = vsyncpa [#allocation6], 0
    %21 = vsyncpa [#allocation9], 0
    %22 = vsyncpa [#allocation4], 0
    // Predicated region
    $region2: #{tpu_custom_call.1} parent=1 // pred_check
      _
    $region3: #{tpu_custom_call.1} parent=1 // pred_check_branch
      %24 = sbr.rel (0) target = $region5
    $region4: #{tpu_custom_call.1} parent=1 // pred_region
      _
    $region5: #{tpu_custom_call.1} parent=1 // pred_fallthru
      _
    // Predicated region
    $region6: #{tpu_custom_call.1} parent=1 // pred_check
      _
    $region7: #{tpu_custom_call.1} parent=1 // pred_check_branch
      %26 = sbr.rel (0) target = $region9
    $region8: #{tpu_custom_call.1} parent=1 // pred_region
      _
    $region9: #{tpu_custom_call.1} parent=1 // pred_fallthru
      _
    // Predicated region
    $region10: #{tpu_custom_call.1} parent=1 // pred_check
      _
    $region11: #{tpu_custom_call.1} parent=1 // pred_check_branch
      %28 = sbr.rel (0) target = $region13
    $region12: #{tpu_custom_call.1} parent=1 // pred_region
      _
    $region13: #{tpu_custom_call.1} parent=1 // pred_fallthru
      _
    // Predicated region
    $region14: #{tpu_custom_call.1} parent=1 // pred_check
      _
    $region15: #{tpu_custom_call.1} parent=1 // pred_check_branch
      %30 = sbr.rel (0) target = $region17
    $region16: #{tpu_custom_call.1} parent=1 // pred_region
      %s32 = ssub.s32 16, 16
      %33 = vsyncadd [#allocation3], %s32
      %s35 = sshll.u32 [#allocation2], 4
      %s36 = int_to_ptr.vmem [resolvable:$true] %s35
      %38 = dma.hbm_to_vmem [thread:$0]  %s3, 16, %s36, [#allocation3]
    $region17: #{tpu_custom_call.1} parent=1 // pred_fallthru
      _
    // Predicated region
    $region18: #{tpu_custom_call.1} parent=1 // pred_check
      _
    $region19: #{tpu_custom_call.1} parent=1 // pred_check_branch
      %40 = sbr.rel (0) target = $region21
    $region20: #{tpu_custom_call.1} parent=1 // pred_region
      _
    $region21: #{tpu_custom_call.1} parent=1 // pred_fallthru
      _
    // Predicated region
    $region22: #{tpu_custom_call.1} parent=1 // pred_check
      _
    $region23: #{tpu_custom_call.1} parent=1 // pred_check_branch
      %42 = sbr.rel (0) target = $region25
    $region24: #{tpu_custom_call.1} parent=1 // pred_region
      %s44 = ssub.s32 16, 16
      %45 = vsyncadd [#allocation6], %s44
      %s47 = sshll.u32 [#allocation5], 4
      %s48 = int_to_ptr.vmem [resolvable:$true] %s47
      %50 = dma.hbm_to_vmem [thread:$0]  %s5, 16, %s48, [#allocation6]
    $region25: #{tpu_custom_call.1} parent=1 // pred_fallthru
      _
    // Predicated region
    $region26: #{tpu_custom_call.1} parent=1 // pred_check
      _
    $region27: #{tpu_custom_call.1} parent=1 // pred_check_branch
      %52 = sbr.rel (0) target = $region29
    $region28: #{tpu_custom_call.1} parent=1 // pred_region
      %s54 = ssub.s32 64, 64
      %55 = vsyncadd [#allocation6], %s54
      %s57 = sshll.u32 [#allocation7], 4
      %s58 = int_to_ptr.vmem [resolvable:$true] %s57
      %60 = dma.hbm_to_vmem [thread:$0]  %s6, 64, %s58, [#allocation6]
    $region29: #{tpu_custom_call.1} parent=1 // pred_fallthru
      _
    // Predicated region
    $region30: #{tpu_custom_call.1} parent=1 // pred_check
      _
    $region31: #{tpu_custom_call.1} parent=1 // pred_check_branch
      %62 = sbr.rel (0) target = $region33
    $region32: #{tpu_custom_call.1} parent=1 // pred_region
      %s64 = ssub.s32 16, 16
      %65 = vsyncadd [#allocation9], %s64
      %s67 = sshll.u32 [#allocation8], 4
      %s68 = int_to_ptr.vmem [resolvable:$true] %s67
      %70 = dma.hbm_to_vmem [thread:$0]  %s7, 16, %s68, [#allocation9]
    $region33: #{tpu_custom_call.1} parent=1 // pred_fallthru
      _
    // Predicated region
    $region34: #{tpu_custom_call.1} parent=1 // pred_check
      _
    $region35: #{tpu_custom_call.1} parent=1 // pred_check_branch
      %72 = sbr.rel (0) target = $region37
    $region36: #{tpu_custom_call.1} parent=1 // pred_region
      _
    $region37: #{tpu_custom_call.1} parent=1 // pred_fallthru
      _
    // Predicated region
    $region38: #{tpu_custom_call.1} parent=1 // pred_check
      _
    $region39: #{tpu_custom_call.1} parent=1 // pred_check_branch
      %74 = sbr.rel (0) target = $region41
    $region40: #{tpu_custom_call.1} parent=1 // pred_region
      _
    $region41: #{tpu_custom_call.1} parent=1 // pred_fallthru
      _
    // Predicated region
    $region42: #{tpu_custom_call.1} parent=1 // pred_check
      _
    $region43: #{tpu_custom_call.1} parent=1 // pred_check_branch
      %76 = sbr.rel (0) target = $region45
    $region44: #{tpu_custom_call.1} parent=1 // pred_region
      _
    $region45: #{tpu_custom_call.1} parent=1 // pred_fallthru
      _
    // Predicated region
    $region46: #{tpu_custom_call.1} parent=1 // pred_check
      _
    $region47: #{tpu_custom_call.1} parent=1 // pred_check_branch
      %78 = sbr.rel (0) target = $region49
    $region48: #{tpu_custom_call.1} parent=1 // pred_region
      _
    $region49: #{tpu_custom_call.1} parent=1 // pred_fallthru
      _
    // Predicated region
    $region50: #{tpu_custom_call.1} parent=1 // pred_check
      _
    $region51: #{tpu_custom_call.1} parent=1 // pred_check_branch
      %80 = sbr.rel (0) target = $region53
    $region52: #{tpu_custom_call.1} parent=1 // pred_region
      _
    $region53: #{tpu_custom_call.1} parent=1 // pred_fallthru
      _
    // Predicated region
    $region54: #{tpu_custom_call.1} parent=1 // pred_check
      _
    $region55: #{tpu_custom_call.1} parent=1 // pred_check_branch
      %82 = sbr.rel (0) target = $region57
    $region56: #{tpu_custom_call.1} parent=1 // pred_region
      _
    $region57: #{tpu_custom_call.1} parent=1 // pred_fallthru
      _
    // Predicated region
    $region58: #{tpu_custom_call.1} parent=1 // pred_check
      _
    $region59: #{tpu_custom_call.1} parent=1 // pred_check_branch
      %84 = sbr.rel (0) target = $region61
    $region60: #{tpu_custom_call.1} parent=1 // pred_region
      %85 = dma.done [#allocation3], 16
    $region61: #{tpu_custom_call.1} parent=1 // pred_fallthru
      _
    // Predicated region
    $region62: #{tpu_custom_call.1} parent=1 // pred_check
      _
    $region63: #{tpu_custom_call.1} parent=1 // pred_check_branch
      %87 = sbr.rel (0) target = $region65
    $region64: #{tpu_custom_call.1} parent=1 // pred_region
      %88 = dma.done [#allocation6], 16
    $region65: #{tpu_custom_call.1} parent=1 // pred_fallthru
      _
    // Predicated region
    $region66: #{tpu_custom_call.1} parent=1 // pred_check
      _
    $region67: #{tpu_custom_call.1} parent=1 // pred_check_branch
      %90 = sbr.rel (0) target = $region69
    $region68: #{tpu_custom_call.1} parent=1 // pred_region
      %91 = dma.done [#allocation6], 64
    $region69: #{tpu_custom_call.1} parent=1 // pred_fallthru
      _
    // Predicated region
    $region70: #{tpu_custom_call.1} parent=1 // pred_check
      _
    $region71: #{tpu_custom_call.1} parent=1 // pred_check_branch
      %93 = sbr.rel (0) target = $region73
    $region72: #{tpu_custom_call.1} parent=1 // pred_region
      %94 = dma.done [#allocation9], 16
    $region73: #{tpu_custom_call.1} parent=1 // pred_fallthru
      _
    %v95 = vld [vmem:[%s0] sm:$0xff]
    %v96 = vld [vmem:[%s0 + $0x8] sm:$0xff]
    %v97 = vld [vmem:[%s0 + $0x10] sm:$0xff]
    %v98 = vld [vmem:[%s0 + $0x18] sm:$0xff]
    %v99 = vld [vmem:[%s0 + $0x20] sm:$0xff]
    %v100 = vld [vmem:[%s0 + $0x28] sm:$0xff]
    %v101 = vld [vmem:[%s0 + $0x30] sm:$0xff]
    %v102 = vld [vmem:[%s0 + $0x38] sm:$0xff]
    %v103 = vld [vmem:[%s1] sm:$0xff]
    %v104 = vld [vmem:[%s1 + $0x8] sm:$0xf]
    %v105 = vld [vmem:[%s2] sm:$0xff]
    %v106 = vld [vmem:[%s2 + $0x8] sm:$0xff]
    %v107 = vld [vmem:[%s2 + $0x10] sm:$0xff]
    %v108 = vld [vmem:[%s2 + $0x18] sm:$0xff]
    %v109 = vld [vmem:[#allocation2] sm:$0x1]
    %v111 = vlaneseq
    %v112 = vshrl.u32 %v111, 7
    %v113 = vsub.s32 0, %v112
    %v114 = vrot.slane %v109, %v113
    %vm116 = vcmask 97280
    %v118 = vsel %vm116, %v95, 0
    %v121 = vsel %vm116, %v96, 0
    %v124 = vsel %vm116, %v97, 0
    %v127 = vsel %vm116, %v98, 0
    %v130 = vsel %vm116, %v99, 0
    %v133 = vsel %vm116, %v100, 0
    %v136 = vsel %vm116, %v101, 0
    %v139 = vsel %vm116, %v102, 0
    %vm141 = vcmask 1043456
    %v143 = vsel %vm141, %v104, 0
    %145 = vmatprep.subr.mxu0 0.0
    %146 = vmatpush1.msra.mxu0 0.0
    %147 = vmatprep.subr.mxu0 0.0
    %148 = vmatpush1.msra.mxu0 0.0
    %149 = vmatprep.subr.mxu0 0.0
    %150 = vmatpush1.msra.mxu0 0.0
    %151 = vmatprep.subr.mxu0 0.0
    %152 = vmatpush1.msra.mxu0 0.0
    %153 = vmatprep.subr.mxu0 0.0
    %154 = vmatpush1.msra.mxu0 0.0
    %155 = vmatprep.subr.mxu0 0.0
    %156 = vmatpush1.msra.mxu0 0.0
    %157 = vmatprep.subr.mxu0 0.0
    %158 = vmatpush1.msra.mxu0 0.0
    %159 = vmatprep.subr.mxu0 0.0
    %160 = vmatpush1.msra.mxu0 0.0
    %161 = vmatprep.subr.mxu0 0.0
    %162 = vmatpush1.msra.mxu0 0.0
    %163 = vmatprep.subr.mxu0 0.0
    %164 = vmatpush1.msra.mxu0 0.0
    %165 = vmatprep.subr.mxu0 0.0
    %166 = vmatpush1.msra.mxu0 0.0
    %167 = vmatprep.subr.mxu0 0.0
    %168 = vmatpush1.msra.mxu0 0.0
    %169 = vmatprep.subr.mxu0 0.0
    %170 = vmatpush1.msra.mxu0 0.0
    %171 = vmatprep.subr.mxu0 0.0
    %172 = vmatpush1.msra.mxu0 0.0
    %173 = vmatprep.subr.mxu0 0.0
    %174 = vmatpush1.msra.mxu0 %v143
    %175 = vmatprep.subr.mxu0 0.0
    %176 = vmatpush1.msra.mxu0 %v103
    %177 = vmatprep.subr.mxu0 0.0
    %178 = vmatpush2.msra.mxu0 0.0
    %179 = vmatprep.subr.mxu0 0.0
    %180 = vmatpush2.msra.mxu0 0.0
    %181 = vmatprep.subr.mxu0 0.0
    %182 = vmatpush2.msra.mxu0 0.0
    %183 = vmatprep.subr.mxu0 0.0
    %184 = vmatpush2.msra.mxu0 0.0
    %185 = vmatprep.subr.mxu0 0.0
    %186 = vmatpush2.msra.mxu0 0.0
    %187 = vmatprep.subr.mxu0 0.0
    %188 = vmatpush2.msra.mxu0 0.0
    %189 = vmatprep.subr.mxu0 0.0
    %190 = vmatpush2.msra.mxu0 0.0
    %191 = vmatprep.subr.mxu0 0.0
    %192 = vmatpush2.msra.mxu0 0.0
    %193 = vmatprep.subr.mxu0 0.0
    %194 = vmatpush2.msra.mxu0 0.0
    %195 = vmatprep.subr.mxu0 0.0
    %196 = vmatpush2.msra.mxu0 0.0
    %197 = vmatprep.subr.mxu0 0.0
    %198 = vmatpush2.msra.mxu0 0.0
    %199 = vmatprep.subr.mxu0 0.0
    %200 = vmatpush2.msra.mxu0 0.0
    %201 = vmatprep.subr.mxu0 0.0
    %202 = vmatpush2.msra.mxu0 0.0
    %203 = vmatprep.subr.mxu0 0.0
    %204 = vmatpush2.msra.mxu0 0.0
    %205 = vmatprep.subr.mxu0 0.0
    %206 = vmatpush2.msra.mxu0 0.0
    %207 = vmatprep.subr.mxu0 0.0
    %208 = vmatpush2.msra.mxu0 0.0
    %209 = vmatprep.mubr.f32.mxu0 0.0
    %210 = vmatmul.mubr.f32.gmra.mxu0 %v118
    %v211 = vpop.f32.mrf.mxu0
    %v212 = vadd.f32 %v114, %v211
    %v213 = vpop.f32.mrf.mxu0
    %214 = vmatprep.mubr.f32.mxu0 0.0
    %215 = vmatmul.mubr.f32.gmra.mxu0 %v121
    %v216 = vpop.f32.mrf.mxu0
    %v217 = vadd.f32 %v114, %v216
    %v218 = vpop.f32.mrf.mxu0
    %219 = vmatprep.mubr.f32.mxu0 0.0
    %220 = vmatmul.mubr.f32.gmra.mxu0 %v124
    %v221 = vpop.f32.mrf.mxu0
    %v222 = vadd.f32 %v114, %v221
    %v223 = vpop.f32.mrf.mxu0
    %224 = vmatprep.mubr.f32.mxu0 0.0
    %225 = vmatmul.mubr.f32.gmra.mxu0 %v127
    %v226 = vpop.f32.mrf.mxu0
    %v227 = vadd.f32 %v114, %v226
    %v228 = vpop.f32.mrf.mxu0
    %229 = vmatprep.mubr.f32.mxu0 0.0
    %230 = vmatmul.mubr.f32.gmra.mxu0 %v130
    %v231 = vpop.f32.mrf.mxu0
    %v232 = vadd.f32 %v114, %v231
    %v233 = vpop.f32.mrf.mxu0
    %234 = vmatprep.mubr.f32.mxu0 0.0
    %235 = vmatmul.mubr.f32.gmra.mxu0 %v133
    %v236 = vpop.f32.mrf.mxu0
    %v237 = vadd.f32 %v114, %v236
    %v238 = vpop.f32.mrf.mxu0
    %239 = vmatprep.mubr.f32.mxu0 0.0
    %240 = vmatmul.mubr.f32.gmra.mxu0 %v136
    %v241 = vpop.f32.mrf.mxu0
    %v242 = vadd.f32 %v114, %v241
    %v243 = vpop.f32.mrf.mxu0
    %244 = vmatprep.mubr.f32.mxu0 0.0
    %245 = vmatmul.mubr.f32.gmra.mxu0 %v139
    %v246 = vpop.f32.mrf.mxu0
    %v247 = vadd.f32 %v114, %v246
    %v248 = vpop.f32.mrf.mxu0
    %249 = vdwg.mxu0
    %v250 = vlaneseq
    %v251 = vand.u32 %v250, 127
    %vm252 = vcmp.lt.s32.totalorder %v251, 96
    %v253 = vsel %vm252, 0.5, 1.0
    %v254 = vsel %vm252, 0.5, 0.0
    %vm255 = vcmask 261120
    %v257 = vsel %vm255, 0.0, 0
    %259 = vmatprep.subr.mxu0 0.0
    %260 = vmatpush1.msra.mxu0 0.0
    %261 = vmatprep.subr.mxu0 0.0
    %262 = vmatpush1.msra.mxu0 0.0
    %263 = vmatprep.subr.mxu0 0.0
    %264 = vmatpush1.msra.mxu0 0.0
    %265 = vmatprep.subr.mxu0 0.0
    %266 = vmatpush1.msra.mxu0 0.0
    %267 = vmatprep.subr.mxu0 0.0
    %268 = vmatpush1.msra.mxu0 0.0
    %269 = vmatprep.subr.mxu0 0.0
    %270 = vmatpush1.msra.mxu0 0.0
    %271 = vmatprep.subr.mxu0 0.0
    %272 = vmatpush1.msra.mxu0 0.0
    %273 = vmatprep.subr.mxu0 0.0
    %274 = vmatpush1.msra.mxu0 0.0
    %275 = vmatprep.subr.mxu0 0.0
    %276 = vmatpush1.msra.mxu0 0.0
    %277 = vmatprep.subr.mxu0 0.0
    %278 = vmatpush1.msra.mxu0 0.0
    %279 = vmatprep.subr.mxu0 0.0
    %280 = vmatpush1.msra.mxu0 0.0
    %281 = vmatprep.subr.mxu0 0.0
    %282 = vmatpush1.msra.mxu0 0.0
    %283 = vmatprep.subr.mxu0 0.0
    %284 = vmatpush1.msra.mxu0 %v108
    %285 = vmatprep.subr.mxu0 0.0
    %286 = vmatpush1.msra.mxu0 %v107
    %287 = vmatprep.subr.mxu0 0.0
    %288 = vmatpush1.msra.mxu0 %v106
    %289 = vmatprep.subr.mxu0 0.0
    %290 = vmatpush1.msra.mxu0 %v105
    %291 = vmatprep.subr.mxu0 0.0
    %292 = vmatpush2.msra.mxu0 0.0
    %293 = vmatprep.subr.mxu0 0.0
    %294 = vmatpush2.msra.mxu0 0.0
    %295 = vmatprep.subr.mxu0 0.0
    %296 = vmatpush2.msra.mxu0 0.0
    %297 = vmatprep.subr.mxu0 0.0
    %298 = vmatpush2.msra.mxu0 0.0
    %299 = vmatprep.subr.mxu0 0.0
    %300 = vmatpush2.msra.mxu0 0.0
    %301 = vmatprep.subr.mxu0 0.0
    %302 = vmatpush2.msra.mxu0 0.0
    %303 = vmatprep.subr.mxu0 0.0
    %304 = vmatpush2.msra.mxu0 0.0
    %305 = vmatprep.subr.mxu0 0.0
    %306 = vmatpush2.msra.mxu0 0.0
    %307 = vmatprep.subr.mxu0 0.0
    %308 = vmatpush2.msra.mxu0 0.0
    %309 = vmatprep.subr.mxu0 0.0
    %310 = vmatpush2.msra.mxu0 0.0
    %311 = vmatprep.subr.mxu0 0.0
    %312 = vmatpush2.msra.mxu0 0.0
    %313 = vmatprep.subr.mxu0 0.0
    %314 = vmatpush2.msra.mxu0 0.0
    %315 = vmatprep.subr.mxu0 0.0
    %316 = vmatpush2.msra.mxu0 0.0
    %317 = vmatprep.subr.mxu0 0.0
    %318 = vmatpush2.msra.mxu0 0.0
    %319 = vmatprep.subr.mxu0 0.0
    %320 = vmatpush2.msra.mxu0 0.0
    %321 = vmatprep.subr.mxu0 0.0
    %322 = vmatpush2.msra.mxu0 0.0
    %323 = vmatprep.mubr.f32.mxu0 0.0
    %324 = vmatmul.mubr.f32.gmra.mxu0 %v257
    %v325 = vpop.f32.mrf.mxu0
    %v326 = vadd.f32 0.0, %v325
    %v327 = vpop.f32.mrf.mxu0
    %328 = vdwg.mxu0
    %v329 = vadd.f32 %v212, %v326
    %v330 = vtanh.pop %v329
    %v331 = vmul.f32 %v330, %v253
    %v332 = vadd.f32 %v331, %v254
    %v333 = vmul.f32 %v332, 0.0
    %335 = vrot.lane.b32.xlu0 %v332, 32
    %v336 = vpop.permute.xlu0 %335
    %v338 = vmul.f32 %v332, %v336
    %340 = vrot.lane.b32.xlu0 %v338, 32
    %v341 = vpop.permute.xlu0 %340
    %v343 = vadd.f32 %v333, %v341
    %v344 = vtanh.pop %v343
    %346 = vrot.lane.b32.xlu0 %v344, 32
    %v347 = vpop.permute.xlu0 %346
    %v349 = vmul.f32 %v332, %v347
    %351 = vrot.lane.b32.xlu0 %v349, 64
    %v352 = vpop.permute.xlu0 %351
    %v353 = vsel %vm255, %v352, 0
    %355 = vmatprep.subr.mxu0 0.0
    %356 = vmatpush1.msra.mxu0 0.0
    %357 = vmatprep.subr.mxu0 0.0
    %358 = vmatpush1.msra.mxu0 0.0
    %359 = vmatprep.subr.mxu0 0.0
    %360 = vmatpush1.msra.mxu0 0.0
    %361 = vmatprep.subr.mxu0 0.0
    %362 = vmatpush1.msra.mxu0 0.0
    %363 = vmatprep.subr.mxu0 0.0
    %364 = vmatpush1.msra.mxu0 0.0
    %365 = vmatprep.subr.mxu0 0.0
    %366 = vmatpush1.msra.mxu0 0.0
    %367 = vmatprep.subr.mxu0 0.0
    %368 = vmatpush1.msra.mxu0 0.0
    %369 = vmatprep.subr.mxu0 0.0
    %370 = vmatpush1.msra.mxu0 0.0
    %371 = vmatprep.subr.mxu0 0.0
    %372 = vmatpush1.msra.mxu0 0.0
    %373 = vmatprep.subr.mxu0 0.0
    %374 = vmatpush1.msra.mxu0 0.0
    %375 = vmatprep.subr.mxu0 0.0
    %376 = vmatpush1.msra.mxu0 0.0
    %377 = vmatprep.subr.mxu0 0.0
    %378 = vmatpush1.msra.mxu0 0.0
    %379 = vmatprep.subr.mxu0 0.0
    %380 = vmatpush1.msra.mxu0 %v108
    %381 = vmatprep.subr.mxu0 0.0
    %382 = vmatpush1.msra.mxu0 %v107
    %383 = vmatprep.subr.mxu0 0.0
    %384 = vmatpush1.msra.mxu0 %v106
    %385 = vmatprep.subr.mxu0 0.0
    %386 = vmatpush1.msra.mxu0 %v105
    %387 = vmatprep.subr.mxu0 0.0
    %388 = vmatpush2.msra.mxu0 0.0
    %389 = vmatprep.subr.mxu0 0.0
    %390 = vmatpush2.msra.mxu0 0.0
    %391 = vmatprep.subr.mxu0 0.0
    %392 = vmatpush2.msra.mxu0 0.0
    %393 = vmatprep.subr.mxu0 0.0
    %394 = vmatpush2.msra.mxu0 0.0
    %395 = vmatprep.subr.mxu0 0.0
    %396 = vmatpush2.msra.mxu0 0.0
    %397 = vmatprep.subr.mxu0 0.0
    %398 = vmatpush2.msra.mxu0 0.0
    %399 = vmatprep.subr.mxu0 0.0
    %400 = vmatpush2.msra.mxu0 0.0
    %401 = vmatprep.subr.mxu0 0.0
    %402 = vmatpush2.msra.mxu0 0.0
    %403 = vmatprep.subr.mxu0 0.0
    %404 = vmatpush2.msra.mxu0 0.0
    %405 = vmatprep.subr.mxu0 0.0
    %406 = vmatpush2.msra.mxu0 0.0
    %407 = vmatprep.subr.mxu0 0.0
    %408 = vmatpush2.msra.mxu0 0.0
    %409 = vmatprep.subr.mxu0 0.0
    %410 = vmatpush2.msra.mxu0 0.0
    %411 = vmatprep.subr.mxu0 0.0
    %412 = vmatpush2.msra.mxu0 0.0
    %413 = vmatprep.subr.mxu0 0.0
    %414 = vmatpush2.msra.mxu0 0.0
    %415 = vmatprep.subr.mxu0 0.0
    %416 = vmatpush2.msra.mxu0 0.0
    %417 = vmatprep.subr.mxu0 0.0
    %418 = vmatpush2.msra.mxu0 0.0
    %419 = vmatprep.mubr.f32.mxu0 0.0
    %420 = vmatmul.mubr.f32.gmra.mxu0 %v353
    %v421 = vpop.f32.mrf.mxu0
    %v422 = vadd.f32 0.0, %v421
    %v423 = vpop.f32.mrf.mxu0
    %424 = vdwg.mxu0
    %v425 = vadd.f32 %v217, %v422
    %v426 = vtanh.pop %v425
    %v427 = vmul.f32 %v426, %v253
    %v428 = vadd.f32 %v427, %v254
    %v429 = vmul.f32 %v428, %v343
    %431 = vrot.lane.b32.xlu0 %v428, 32
    %v432 = vpop.permute.xlu0 %431
    %v434 = vmul.f32 %v428, %v432
    %436 = vrot.lane.b32.xlu0 %v434, 32
    %v437 = vpop.permute.xlu0 %436
    %v439 = vadd.f32 %v429, %v437
    %v440 = vtanh.pop %v439
    %442 = vrot.lane.b32.xlu0 %v440, 32
    %v443 = vpop.permute.xlu0 %442
    %v445 = vmul.f32 %v428, %v443
    %447 = vrot.lane.b32.xlu0 %v445, 64
    %v448 = vpop.permute.xlu0 %447
    %v449 = vsel %vm255, %v448, 0
    %451 = vmatprep.subr.mxu0 0.0
    %452 = vmatpush1.msra.mxu0 0.0
    %453 = vmatprep.subr.mxu0 0.0
    %454 = vmatpush1.msra.mxu0 0.0
    %455 = vmatprep.subr.mxu0 0.0
    %456 = vmatpush1.msra.mxu0 0.0
    %457 = vmatprep.subr.mxu0 0.0
    %458 = vmatpush1.msra.mxu0 0.0
    %459 = vmatprep.subr.mxu0 0.0
    %460 = vmatpush1.msra.mxu0 0.0
    %461 = vmatprep.subr.mxu0 0.0
    %462 = vmatpush1.msra.mxu0 0.0
    %463 = vmatprep.subr.mxu0 0.0
    %464 = vmatpush1.msra.mxu0 0.0
    %465 = vmatprep.subr.mxu0 0.0
    %466 = vmatpush1.msra.mxu0 0.0
    %467 = vmatprep.subr.mxu0 0.0
    %468 = vmatpush1.msra.mxu0 0.0
    %469 = vmatprep.subr.mxu0 0.0
    %470 = vmatpush1.msra.mxu0 0.0
    %471 = vmatprep.subr.mxu0 0.0
    %472 = vmatpush1.msra.mxu0 0.0
    %473 = vmatprep.subr.mxu0 0.0
    %474 = vmatpush1.msra.mxu0 0.0
    %475 = vmatprep.subr.mxu0 0.0
    %476 = vmatpush1.msra.mxu0 %v108
    %477 = vmatprep.subr.mxu0 0.0
    %478 = vmatpush1.msra.mxu0 %v107
    %479 = vmatprep.subr.mxu0 0.0
    %480 = vmatpush1.msra.mxu0 %v106
    %481 = vmatprep.subr.mxu0 0.0
    %482 = vmatpush1.msra.mxu0 %v105
    %483 = vmatprep.subr.mxu0 0.0
    %484 = vmatpush2.msra.mxu0 0.0
    %485 = vmatprep.subr.mxu0 0.0
    %486 = vmatpush2.msra.mxu0 0.0
    %487 = vmatprep.subr.mxu0 0.0
    %488 = vmatpush2.msra.mxu0 0.0
    %489 = vmatprep.subr.mxu0 0.0
    %490 = vmatpush2.msra.mxu0 0.0
    %491 = vmatprep.subr.mxu0 0.0
    %492 = vmatpush2.msra.mxu0 0.0
    %493 = vmatprep.subr.mxu0 0.0
    %494 = vmatpush2.msra.mxu0 0.0
    %495 = vmatprep.subr.mxu0 0.0
    %496 = vmatpush2.msra.mxu0 0.0
    %497 = vmatprep.subr.mxu0 0.0
    %498 = vmatpush2.msra.mxu0 0.0
    %499 = vmatprep.subr.mxu0 0.0
    %500 = vmatpush2.msra.mxu0 0.0
    %501 = vmatprep.subr.mxu0 0.0
    %502 = vmatpush2.msra.mxu0 0.0
    %503 = vmatprep.subr.mxu0 0.0
    %504 = vmatpush2.msra.mxu0 0.0
    %505 = vmatprep.subr.mxu0 0.0
    %506 = vmatpush2.msra.mxu0 0.0
    %507 = vmatprep.subr.mxu0 0.0
    %508 = vmatpush2.msra.mxu0 0.0
    %509 = vmatprep.subr.mxu0 0.0
    %510 = vmatpush2.msra.mxu0 0.0
    %511 = vmatprep.subr.mxu0 0.0
    %512 = vmatpush2.msra.mxu0 0.0
    %513 = vmatprep.subr.mxu0 0.0
    %514 = vmatpush2.msra.mxu0 0.0
    %515 = vmatprep.mubr.f32.mxu0 0.0
    %516 = vmatmul.mubr.f32.gmra.mxu0 %v449
    %v517 = vpop.f32.mrf.mxu0
    %v518 = vadd.f32 0.0, %v517
    %v519 = vpop.f32.mrf.mxu0
    %520 = vdwg.mxu0
    %v521 = vadd.f32 %v222, %v518
    %v522 = vtanh.pop %v521
    %v523 = vmul.f32 %v522, %v253
    %v524 = vadd.f32 %v523, %v254
    %v525 = vmul.f32 %v524, %v439
    %527 = vrot.lane.b32.xlu0 %v524, 32
    %v528 = vpop.permute.xlu0 %527
    %v530 = vmul.f32 %v524, %v528
    %532 = vrot.lane.b32.xlu0 %v530, 32
    %v533 = vpop.permute.xlu0 %532
    %v535 = vadd.f32 %v525, %v533
    %v536 = vtanh.pop %v535
    %538 = vrot.lane.b32.xlu0 %v536, 32
    %v539 = vpop.permute.xlu0 %538
    %v541 = vmul.f32 %v524, %v539
    %543 = vrot.lane.b32.xlu0 %v541, 64
    %v544 = vpop.permute.xlu0 %543
    %v545 = vsel %vm255, %v544, 0
    %547 = vmatprep.subr.mxu0 0.0
    %548 = vmatpush1.msra.mxu0 0.0
    %549 = vmatprep.subr.mxu0 0.0
    %550 = vmatpush1.msra.mxu0 0.0
    %551 = vmatprep.subr.mxu0 0.0
    %552 = vmatpush1.msra.mxu0 0.0
    %553 = vmatprep.subr.mxu0 0.0
    %554 = vmatpush1.msra.mxu0 0.0
    %555 = vmatprep.subr.mxu0 0.0
    %556 = vmatpush1.msra.mxu0 0.0
    %557 = vmatprep.subr.mxu0 0.0
    %558 = vmatpush1.msra.mxu0 0.0
    %559 = vmatprep.subr.mxu0 0.0
    %560 = vmatpush1.msra.mxu0 0.0
    %561 = vmatprep.subr.mxu0 0.0
    %562 = vmatpush1.msra.mxu0 0.0
    %563 = vmatprep.subr.mxu0 0.0
    %564 = vmatpush1.msra.mxu0 0.0
    %565 = vmatprep.subr.mxu0 0.0
    %566 = vmatpush1.msra.mxu0 0.0
    %567 = vmatprep.subr.mxu0 0.0
    %568 = vmatpush1.msra.mxu0 0.0
    %569 = vmatprep.subr.mxu0 0.0
    %570 = vmatpush1.msra.mxu0 0.0
    %571 = vmatprep.subr.mxu0 0.0
    %572 = vmatpush1.msra.mxu0 %v108
    %573 = vmatprep.subr.mxu0 0.0
    %574 = vmatpush1.msra.mxu0 %v107
    %575 = vmatprep.subr.mxu0 0.0
    %576 = vmatpush1.msra.mxu0 %v106
    %577 = vmatprep.subr.mxu0 0.0
    %578 = vmatpush1.msra.mxu0 %v105
    %579 = vmatprep.subr.mxu0 0.0
    %580 = vmatpush2.msra.mxu0 0.0
    %581 = vmatprep.subr.mxu0 0.0
    %582 = vmatpush2.msra.mxu0 0.0
    %583 = vmatprep.subr.mxu0 0.0
    %584 = vmatpush2.msra.mxu0 0.0
    %585 = vmatprep.subr.mxu0 0.0
    %586 = vmatpush2.msra.mxu0 0.0
    %587 = vmatprep.subr.mxu0 0.0
    %588 = vmatpush2.msra.mxu0 0.0
    %589 = vmatprep.subr.mxu0 0.0
    %590 = vmatpush2.msra.mxu0 0.0
    %591 = vmatprep.subr.mxu0 0.0
    %592 = vmatpush2.msra.mxu0 0.0
    %593 = vmatprep.subr.mxu0 0.0
    %594 = vmatpush2.msra.mxu0 0.0
    %595 = vmatprep.subr.mxu0 0.0
    %596 = vmatpush2.msra.mxu0 0.0
    %597 = vmatprep.subr.mxu0 0.0
    %598 = vmatpush2.msra.mxu0 0.0
    %599 = vmatprep.subr.mxu0 0.0
    %600 = vmatpush2.msra.mxu0 0.0
    %601 = vmatprep.subr.mxu0 0.0
    %602 = vmatpush2.msra.mxu0 0.0
    %603 = vmatprep.subr.mxu0 0.0
    %604 = vmatpush2.msra.mxu0 0.0
    %605 = vmatprep.subr.mxu0 0.0
    %606 = vmatpush2.msra.mxu0 0.0
    %607 = vmatprep.subr.mxu0 0.0
    %608 = vmatpush2.msra.mxu0 0.0
    %609 = vmatprep.subr.mxu0 0.0
    %610 = vmatpush2.msra.mxu0 0.0
    %611 = vmatprep.mubr.f32.mxu0 0.0
    %612 = vmatmul.mubr.f32.gmra.mxu0 %v545
    %v613 = vpop.f32.mrf.mxu0
    %v614 = vadd.f32 0.0, %v613
    %v615 = vpop.f32.mrf.mxu0
    %616 = vdwg.mxu0
    %v617 = vadd.f32 %v227, %v614
    %v618 = vtanh.pop %v617
    %v619 = vmul.f32 %v618, %v253
    %v620 = vadd.f32 %v619, %v254
    %v621 = vmul.f32 %v620, %v535
    %623 = vrot.lane.b32.xlu0 %v620, 32
    %v624 = vpop.permute.xlu0 %623
    %v626 = vmul.f32 %v620, %v624
    %628 = vrot.lane.b32.xlu0 %v626, 32
    %v629 = vpop.permute.xlu0 %628
    %v631 = vadd.f32 %v621, %v629
    %v632 = vtanh.pop %v631
    %634 = vrot.lane.b32.xlu0 %v632, 32
    %v635 = vpop.permute.xlu0 %634
    %v637 = vmul.f32 %v620, %v635
    %639 = vrot.lane.b32.xlu0 %v637, 64
    %v640 = vpop.permute.xlu0 %639
    %v641 = vsel %vm255, %v640, 0
    %643 = vmatprep.subr.mxu0 0.0
    %644 = vmatpush1.msra.mxu0 0.0
    %645 = vmatprep.subr.mxu0 0.0
    %646 = vmatpush1.msra.mxu0 0.0
    %647 = vmatprep.subr.mxu0 0.0
    %648 = vmatpush1.msra.mxu0 0.0
    %649 = vmatprep.subr.mxu0 0.0
    %650 = vmatpush1.msra.mxu0 0.0
    %651 = vmatprep.subr.mxu0 0.0
    %652 = vmatpush1.msra.mxu0 0.0
    %653 = vmatprep.subr.mxu0 0.0
    %654 = vmatpush1.msra.mxu0 0.0
    %655 = vmatprep.subr.mxu0 0.0
    %656 = vmatpush1.msra.mxu0 0.0
    %657 = vmatprep.subr.mxu0 0.0
    %658 = vmatpush1.msra.mxu0 0.0
    %659 = vmatprep.subr.mxu0 0.0
    %660 = vmatpush1.msra.mxu0 0.0
    %661 = vmatprep.subr.mxu0 0.0
    %662 = vmatpush1.msra.mxu0 0.0
    %663 = vmatprep.subr.mxu0 0.0
    %664 = vmatpush1.msra.mxu0 0.0
    %665 = vmatprep.subr.mxu0 0.0
    %666 = vmatpush1.msra.mxu0 0.0
    %667 = vmatprep.subr.mxu0 0.0
    %668 = vmatpush1.msra.mxu0 %v108
    %669 = vmatprep.subr.mxu0 0.0
    %670 = vmatpush1.msra.mxu0 %v107
    %671 = vmatprep.subr.mxu0 0.0
    %672 = vmatpush1.msra.mxu0 %v106
    %673 = vmatprep.subr.mxu0 0.0
    %674 = vmatpush1.msra.mxu0 %v105
    %675 = vmatprep.subr.mxu0 0.0
    %676 = vmatpush2.msra.mxu0 0.0
    %677 = vmatprep.subr.mxu0 0.0
    %678 = vmatpush2.msra.mxu0 0.0
    %679 = vmatprep.subr.mxu0 0.0
    %680 = vmatpush2.msra.mxu0 0.0
    %681 = vmatprep.subr.mxu0 0.0
    %682 = vmatpush2.msra.mxu0 0.0
    %683 = vmatprep.subr.mxu0 0.0
    %684 = vmatpush2.msra.mxu0 0.0
    %685 = vmatprep.subr.mxu0 0.0
    %686 = vmatpush2.msra.mxu0 0.0
    %687 = vmatprep.subr.mxu0 0.0
    %688 = vmatpush2.msra.mxu0 0.0
    %689 = vmatprep.subr.mxu0 0.0
    %690 = vmatpush2.msra.mxu0 0.0
    %691 = vmatprep.subr.mxu0 0.0
    %692 = vmatpush2.msra.mxu0 0.0
    %693 = vmatprep.subr.mxu0 0.0
    %694 = vmatpush2.msra.mxu0 0.0
    %695 = vmatprep.subr.mxu0 0.0
    %696 = vmatpush2.msra.mxu0 0.0
    %697 = vmatprep.subr.mxu0 0.0
    %698 = vmatpush2.msra.mxu0 0.0
    %699 = vmatprep.subr.mxu0 0.0
    %700 = vmatpush2.msra.mxu0 0.0
    %701 = vmatprep.subr.mxu0 0.0
    %702 = vmatpush2.msra.mxu0 0.0
    %703 = vmatprep.subr.mxu0 0.0
    %704 = vmatpush2.msra.mxu0 0.0
    %705 = vmatprep.subr.mxu0 0.0
    %706 = vmatpush2.msra.mxu0 0.0
    %707 = vmatprep.mubr.f32.mxu0 0.0
    %708 = vmatmul.mubr.f32.gmra.mxu0 %v641
    %v709 = vpop.f32.mrf.mxu0
    %v710 = vadd.f32 0.0, %v709
    %v711 = vpop.f32.mrf.mxu0
    %712 = vdwg.mxu0
    %v713 = vadd.f32 %v232, %v710
    %v714 = vtanh.pop %v713
    %v715 = vmul.f32 %v714, %v253
    %v716 = vadd.f32 %v715, %v254
    %v717 = vmul.f32 %v716, %v631
    %719 = vrot.lane.b32.xlu0 %v716, 32
    %v720 = vpop.permute.xlu0 %719
    %v722 = vmul.f32 %v716, %v720
    %724 = vrot.lane.b32.xlu0 %v722, 32
    %v725 = vpop.permute.xlu0 %724
    %v727 = vadd.f32 %v717, %v725
    %v728 = vtanh.pop %v727
    %730 = vrot.lane.b32.xlu0 %v728, 32
    %v731 = vpop.permute.xlu0 %730
    %v733 = vmul.f32 %v716, %v731
    %735 = vrot.lane.b32.xlu0 %v733, 64
    %v736 = vpop.permute.xlu0 %735
    %v737 = vsel %vm255, %v736, 0
    %739 = vmatprep.subr.mxu0 0.0
    %740 = vmatpush1.msra.mxu0 0.0
    %741 = vmatprep.subr.mxu0 0.0
    %742 = vmatpush1.msra.mxu0 0.0
    %743 = vmatprep.subr.mxu0 0.0
    %744 = vmatpush1.msra.mxu0 0.0
    %745 = vmatprep.subr.mxu0 0.0
    %746 = vmatpush1.msra.mxu0 0.0
    %747 = vmatprep.subr.mxu0 0.0
    %748 = vmatpush1.msra.mxu0 0.0
    %749 = vmatprep.subr.mxu0 0.0
    %750 = vmatpush1.msra.mxu0 0.0
    %751 = vmatprep.subr.mxu0 0.0
    %752 = vmatpush1.msra.mxu0 0.0
    %753 = vmatprep.subr.mxu0 0.0
    %754 = vmatpush1.msra.mxu0 0.0
    %755 = vmatprep.subr.mxu0 0.0
    %756 = vmatpush1.msra.mxu0 0.0
    %757 = vmatprep.subr.mxu0 0.0
    %758 = vmatpush1.msra.mxu0 0.0
    %759 = vmatprep.subr.mxu0 0.0
    %760 = vmatpush1.msra.mxu0 0.0
    %761 = vmatprep.subr.mxu0 0.0
    %762 = vmatpush1.msra.mxu0 0.0
    %763 = vmatprep.subr.mxu0 0.0
    %764 = vmatpush1.msra.mxu0 %v108
    %765 = vmatprep.subr.mxu0 0.0
    %766 = vmatpush1.msra.mxu0 %v107
    %767 = vmatprep.subr.mxu0 0.0
    %768 = vmatpush1.msra.mxu0 %v106
    %769 = vmatprep.subr.mxu0 0.0
    %770 = vmatpush1.msra.mxu0 %v105
    %771 = vmatprep.subr.mxu0 0.0
    %772 = vmatpush2.msra.mxu0 0.0
    %773 = vmatprep.subr.mxu0 0.0
    %774 = vmatpush2.msra.mxu0 0.0
    %775 = vmatprep.subr.mxu0 0.0
    %776 = vmatpush2.msra.mxu0 0.0
    %777 = vmatprep.subr.mxu0 0.0
    %778 = vmatpush2.msra.mxu0 0.0
    %779 = vmatprep.subr.mxu0 0.0
    %780 = vmatpush2.msra.mxu0 0.0
    %781 = vmatprep.subr.mxu0 0.0
    %782 = vmatpush2.msra.mxu0 0.0
    %783 = vmatprep.subr.mxu0 0.0
    %784 = vmatpush2.msra.mxu0 0.0
    %785 = vmatprep.subr.mxu0 0.0
    %786 = vmatpush2.msra.mxu0 0.0
    %787 = vmatprep.subr.mxu0 0.0
    %788 = vmatpush2.msra.mxu0 0.0
    %789 = vmatprep.subr.mxu0 0.0
    %790 = vmatpush2.msra.mxu0 0.0
    %791 = vmatprep.subr.mxu0 0.0
    %792 = vmatpush2.msra.mxu0 0.0
    %793 = vmatprep.subr.mxu0 0.0
    %794 = vmatpush2.msra.mxu0 0.0
    %795 = vmatprep.subr.mxu0 0.0
    %796 = vmatpush2.msra.mxu0 0.0
    %797 = vmatprep.subr.mxu0 0.0
    %798 = vmatpush2.msra.mxu0 0.0
    %799 = vmatprep.subr.mxu0 0.0
    %800 = vmatpush2.msra.mxu0 0.0
    %801 = vmatprep.subr.mxu0 0.0
    %802 = vmatpush2.msra.mxu0 0.0
    %803 = vmatprep.mubr.f32.mxu0 0.0
    %804 = vmatmul.mubr.f32.gmra.mxu0 %v737
    %v805 = vpop.f32.mrf.mxu0
    %v806 = vadd.f32 0.0, %v805
    %v807 = vpop.f32.mrf.mxu0
    %808 = vdwg.mxu0
    %v809 = vadd.f32 %v237, %v806
    %v810 = vtanh.pop %v809
    %v811 = vmul.f32 %v810, %v253
    %v812 = vadd.f32 %v811, %v254
    %v813 = vmul.f32 %v812, %v727
    %815 = vrot.lane.b32.xlu0 %v812, 32
    %v816 = vpop.permute.xlu0 %815
    %v818 = vmul.f32 %v812, %v816
    %820 = vrot.lane.b32.xlu0 %v818, 32
    %v821 = vpop.permute.xlu0 %820
    %v823 = vadd.f32 %v813, %v821
    %v824 = vtanh.pop %v823
    %826 = vrot.lane.b32.xlu0 %v824, 32
    %v827 = vpop.permute.xlu0 %826
    %v829 = vmul.f32 %v812, %v827
    %831 = vrot.lane.b32.xlu0 %v829, 64
    %v832 = vpop.permute.xlu0 %831
    %v833 = vsel %vm255, %v832, 0
    %835 = vmatprep.subr.mxu0 0.0
    %836 = vmatpush1.msra.mxu0 0.0
    %837 = vmatprep.subr.mxu0 0.0
    %838 = vmatpush1.msra.mxu0 0.0
    %839 = vmatprep.subr.mxu0 0.0
    %840 = vmatpush1.msra.mxu0 0.0
    %841 = vmatprep.subr.mxu0 0.0
    %842 = vmatpush1.msra.mxu0 0.0
    %843 = vmatprep.subr.mxu0 0.0
    %844 = vmatpush1.msra.mxu0 0.0
    %845 = vmatprep.subr.mxu0 0.0
    %846 = vmatpush1.msra.mxu0 0.0
    %847 = vmatprep.subr.mxu0 0.0
    %848 = vmatpush1.msra.mxu0 0.0
    %849 = vmatprep.subr.mxu0 0.0
    %850 = vmatpush1.msra.mxu0 0.0
    %851 = vmatprep.subr.mxu0 0.0
    %852 = vmatpush1.msra.mxu0 0.0
    %853 = vmatprep.subr.mxu0 0.0
    %854 = vmatpush1.msra.mxu0 0.0
    %855 = vmatprep.subr.mxu0 0.0
    %856 = vmatpush1.msra.mxu0 0.0
    %857 = vmatprep.subr.mxu0 0.0
    %858 = vmatpush1.msra.mxu0 0.0
    %859 = vmatprep.subr.mxu0 0.0
    %860 = vmatpush1.msra.mxu0 %v108
    %861 = vmatprep.subr.mxu0 0.0
    %862 = vmatpush1.msra.mxu0 %v107
    %863 = vmatprep.subr.mxu0 0.0
    %864 = vmatpush1.msra.mxu0 %v106
    %865 = vmatprep.subr.mxu0 0.0
    %866 = vmatpush1.msra.mxu0 %v105
    %867 = vmatprep.subr.mxu0 0.0
    %868 = vmatpush2.msra.mxu0 0.0
    %869 = vmatprep.subr.mxu0 0.0
    %870 = vmatpush2.msra.mxu0 0.0
    %871 = vmatprep.subr.mxu0 0.0
    %872 = vmatpush2.msra.mxu0 0.0
    %873 = vmatprep.subr.mxu0 0.0
    %874 = vmatpush2.msra.mxu0 0.0
    %875 = vmatprep.subr.mxu0 0.0
    %876 = vmatpush2.msra.mxu0 0.0
    %877 = vmatprep.subr.mxu0 0.0
    %878 = vmatpush2.msra.mxu0 0.0
    %879 = vmatprep.subr.mxu0 0.0
    %880 = vmatpush2.msra.mxu0 0.0
    %881 = vmatprep.subr.mxu0 0.0
    %882 = vmatpush2.msra.mxu0 0.0
    %883 = vmatprep.subr.mxu0 0.0
    %884 = vmatpush2.msra.mxu0 0.0
    %885 = vmatprep.subr.mxu0 0.0
    %886 = vmatpush2.msra.mxu0 0.0
    %887 = vmatprep.subr.mxu0 0.0
    %888 = vmatpush2.msra.mxu0 0.0
    %889 = vmatprep.subr.mxu0 0.0
    %890 = vmatpush2.msra.mxu0 0.0
    %891 = vmatprep.subr.mxu0 0.0
    %892 = vmatpush2.msra.mxu0 0.0
    %893 = vmatprep.subr.mxu0 0.0
    %894 = vmatpush2.msra.mxu0 0.0
    %895 = vmatprep.subr.mxu0 0.0
    %896 = vmatpush2.msra.mxu0 0.0
    %897 = vmatprep.subr.mxu0 0.0
    %898 = vmatpush2.msra.mxu0 0.0
    %899 = vmatprep.mubr.f32.mxu0 0.0
    %900 = vmatmul.mubr.f32.gmra.mxu0 %v833
    %v901 = vpop.f32.mrf.mxu0
    %v902 = vadd.f32 0.0, %v901
    %v903 = vpop.f32.mrf.mxu0
    %904 = vdwg.mxu0
    %v905 = vadd.f32 %v242, %v902
    %v906 = vtanh.pop %v905
    %v907 = vmul.f32 %v906, %v253
    %v908 = vadd.f32 %v907, %v254
    %v909 = vmul.f32 %v908, %v823
    %911 = vrot.lane.b32.xlu0 %v908, 32
    %v912 = vpop.permute.xlu0 %911
    %v914 = vmul.f32 %v908, %v912
    %916 = vrot.lane.b32.xlu0 %v914, 32
    %v917 = vpop.permute.xlu0 %916
    %v919 = vadd.f32 %v909, %v917
    %v920 = vtanh.pop %v919
    %922 = vrot.lane.b32.xlu0 %v920, 32
    %v923 = vpop.permute.xlu0 %922
    %v925 = vmul.f32 %v908, %v923
    %927 = vrot.lane.b32.xlu0 %v925, 64
    %v928 = vpop.permute.xlu0 %927
    %v929 = vsel %vm255, %v928, 0
    %931 = vmatprep.subr.mxu0 0.0
    %932 = vmatpush1.msra.mxu0 0.0
    %933 = vmatprep.subr.mxu0 0.0
    %934 = vmatpush1.msra.mxu0 0.0
    %935 = vmatprep.subr.mxu0 0.0
    %936 = vmatpush1.msra.mxu0 0.0
    %937 = vmatprep.subr.mxu0 0.0
    %938 = vmatpush1.msra.mxu0 0.0
    %939 = vmatprep.subr.mxu0 0.0
    %940 = vmatpush1.msra.mxu0 0.0
    %941 = vmatprep.subr.mxu0 0.0
    %942 = vmatpush1.msra.mxu0 0.0
    %943 = vmatprep.subr.mxu0 0.0
    %944 = vmatpush1.msra.mxu0 0.0
    %945 = vmatprep.subr.mxu0 0.0
    %946 = vmatpush1.msra.mxu0 0.0
    %947 = vmatprep.subr.mxu0 0.0
    %948 = vmatpush1.msra.mxu0 0.0
    %949 = vmatprep.subr.mxu0 0.0
    %950 = vmatpush1.msra.mxu0 0.0
    %951 = vmatprep.subr.mxu0 0.0
    %952 = vmatpush1.msra.mxu0 0.0
    %953 = vmatprep.subr.mxu0 0.0
    %954 = vmatpush1.msra.mxu0 0.0
    %955 = vmatprep.subr.mxu0 0.0
    %956 = vmatpush1.msra.mxu0 %v108
    %957 = vmatprep.subr.mxu0 0.0
    %958 = vmatpush1.msra.mxu0 %v107
    %959 = vmatprep.subr.mxu0 0.0
    %960 = vmatpush1.msra.mxu0 %v106
    %961 = vmatprep.subr.mxu0 0.0
    %962 = vmatpush1.msra.mxu0 %v105
    %963 = vmatprep.subr.mxu0 0.0
    %964 = vmatpush2.msra.mxu0 0.0
    %965 = vmatprep.subr.mxu0 0.0
    %966 = vmatpush2.msra.mxu0 0.0
    %967 = vmatprep.subr.mxu0 0.0
    %968 = vmatpush2.msra.mxu0 0.0
    %969 = vmatprep.subr.mxu0 0.0
    %970 = vmatpush2.msra.mxu0 0.0
    %971 = vmatprep.subr.mxu0 0.0
    %972 = vmatpush2.msra.mxu0 0.0
    %973 = vmatprep.subr.mxu0 0.0
    %974 = vmatpush2.msra.mxu0 0.0
    %975 = vmatprep.subr.mxu0 0.0
    %976 = vmatpush2.msra.mxu0 0.0
    %977 = vmatprep.subr.mxu0 0.0
    %978 = vmatpush2.msra.mxu0 0.0
    %979 = vmatprep.subr.mxu0 0.0
    %980 = vmatpush2.msra.mxu0 0.0
    %981 = vmatprep.subr.mxu0 0.0
    %982 = vmatpush2.msra.mxu0 0.0
    %983 = vmatprep.subr.mxu0 0.0
    %984 = vmatpush2.msra.mxu0 0.0
    %985 = vmatprep.subr.mxu0 0.0
    %986 = vmatpush2.msra.mxu0 0.0
    %987 = vmatprep.subr.mxu0 0.0
    %988 = vmatpush2.msra.mxu0 0.0
    %989 = vmatprep.subr.mxu0 0.0
    %990 = vmatpush2.msra.mxu0 0.0
    %991 = vmatprep.subr.mxu0 0.0
    %992 = vmatpush2.msra.mxu0 0.0
    %993 = vmatprep.subr.mxu0 0.0
    %994 = vmatpush2.msra.mxu0 0.0
    %995 = vmatprep.mubr.f32.mxu0 0.0
    %996 = vmatmul.mubr.f32.gmra.mxu0 %v929
    %v997 = vpop.f32.mrf.mxu0
    %v998 = vadd.f32 0.0, %v997
    %v999 = vpop.f32.mrf.mxu0
    %1000 = vdwg.mxu0
    %v1001 = vadd.f32 %v247, %v998
    %v1002 = vtanh.pop %v1001
    %v1003 = vmul.f32 %v1002, %v253
    %v1004 = vadd.f32 %v1003, %v254
    %v1005 = vmul.f32 %v1004, %v919
    %1007 = vrot.lane.b32.xlu0 %v1004, 32
    %v1008 = vpop.permute.xlu0 %1007
    %v1010 = vmul.f32 %v1004, %v1008
    %1012 = vrot.lane.b32.xlu0 %v1010, 32
    %v1013 = vpop.permute.xlu0 %1012
    %v1015 = vadd.f32 %v1005, %v1013
    %v1016 = vtanh.pop %v1015
    %1018 = vrot.lane.b32.xlu0 %v1016, 32
    %v1019 = vpop.permute.xlu0 %1018
    %v1021 = vmul.f32 %v1004, %v1019
    %v1022 = vld [vmem:[%s4] sm:$0xff]
    %v1023 = vld [vmem:[%s4 + $0x8] sm:$0xff]
    %v1024 = vld [vmem:[%s4 + $0x10] sm:$0xff]
    %v1025 = vld [vmem:[%s4 + $0x18] sm:$0xff]
    %v1026 = vld [vmem:[#allocation5] sm:$0x1]
    %v1028 = vlaneseq
    %v1029 = vshrl.u32 %v1028, 7
    %v1030 = vsub.s32 0, %v1029
    %v1031 = vrot.slane %v1026, %v1030
    %1034 = vrot.lane.b32.xlu0 %v1021, 64
    %v1035 = vpop.permute.xlu0 %1034
    %v1036 = vsel %vm255, %v1035, 0
    %1038 = vmatprep.subr.mxu0 0.0
    %1039 = vmatpush1.msra.mxu0 0.0
    %1040 = vmatprep.subr.mxu0 0.0
    %1041 = vmatpush1.msra.mxu0 0.0
    %1042 = vmatprep.subr.mxu0 0.0
    %1043 = vmatpush1.msra.mxu0 0.0
    %1044 = vmatprep.subr.mxu0 0.0
    %1045 = vmatpush1.msra.mxu0 0.0
    %1046 = vmatprep.subr.mxu0 0.0
    %1047 = vmatpush1.msra.mxu0 0.0
    %1048 = vmatprep.subr.mxu0 0.0
    %1049 = vmatpush1.msra.mxu0 0.0
    %1050 = vmatprep.subr.mxu0 0.0
    %1051 = vmatpush1.msra.mxu0 0.0
    %1052 = vmatprep.subr.mxu0 0.0
    %1053 = vmatpush1.msra.mxu0 0.0
    %1054 = vmatprep.subr.mxu0 0.0
    %1055 = vmatpush1.msra.mxu0 0.0
    %1056 = vmatprep.subr.mxu0 0.0
    %1057 = vmatpush1.msra.mxu0 0.0
    %1058 = vmatprep.subr.mxu0 0.0
    %1059 = vmatpush1.msra.mxu0 0.0
    %1060 = vmatprep.subr.mxu0 0.0
    %1061 = vmatpush1.msra.mxu0 0.0
    %1062 = vmatprep.subr.mxu0 0.0
    %1063 = vmatpush1.msra.mxu0 %v1025
    %1064 = vmatprep.subr.mxu0 0.0
    %1065 = vmatpush1.msra.mxu0 %v1024
    %1066 = vmatprep.subr.mxu0 0.0
    %1067 = vmatpush1.msra.mxu0 %v1023
    %1068 = vmatprep.subr.mxu0 0.0
    %1069 = vmatpush1.msra.mxu0 %v1022
    %1070 = vmatprep.subr.mxu0 0.0
    %1071 = vmatpush2.msra.mxu0 0.0
    %1072 = vmatprep.subr.mxu0 0.0
    %1073 = vmatpush2.msra.mxu0 0.0
    %1074 = vmatprep.subr.mxu0 0.0
    %1075 = vmatpush2.msra.mxu0 0.0
    %1076 = vmatprep.subr.mxu0 0.0
    %1077 = vmatpush2.msra.mxu0 0.0
    %1078 = vmatprep.subr.mxu0 0.0
    %1079 = vmatpush2.msra.mxu0 0.0
    %1080 = vmatprep.subr.mxu0 0.0
    %1081 = vmatpush2.msra.mxu0 0.0
    %1082 = vmatprep.subr.mxu0 0.0
    %1083 = vmatpush2.msra.mxu0 0.0
    %1084 = vmatprep.subr.mxu0 0.0
    %1085 = vmatpush2.msra.mxu0 0.0
    %1086 = vmatprep.subr.mxu0 0.0
    %1087 = vmatpush2.msra.mxu0 0.0
    %1088 = vmatprep.subr.mxu0 0.0
    %1089 = vmatpush2.msra.mxu0 0.0
    %1090 = vmatprep.subr.mxu0 0.0
    %1091 = vmatpush2.msra.mxu0 0.0
    %1092 = vmatprep.subr.mxu0 0.0
    %1093 = vmatpush2.msra.mxu0 0.0
    %1094 = vmatprep.subr.mxu0 0.0
    %1095 = vmatpush2.msra.mxu0 0.0
    %1096 = vmatprep.subr.mxu0 0.0
    %1097 = vmatpush2.msra.mxu0 0.0
    %1098 = vmatprep.subr.mxu0 0.0
    %1099 = vmatpush2.msra.mxu0 0.0
    %1100 = vmatprep.subr.mxu0 0.0
    %1101 = vmatpush2.msra.mxu0 0.0
    %1102 = vmatprep.mubr.f32.mxu0 0.0
    %1103 = vmatmul.mubr.f32.gmra.mxu0 %v353
    %v1104 = vpop.f32.mrf.mxu0
    %v1105 = vadd.f32 %v1031, %v1104
    %v1106 = vpop.f32.mrf.mxu0
    %1107 = vmatprep.mubr.f32.mxu0 0.0
    %1108 = vmatmul.mubr.f32.gmra.mxu0 %v449
    %v1109 = vpop.f32.mrf.mxu0
    %v1110 = vadd.f32 %v1031, %v1109
    %v1111 = vpop.f32.mrf.mxu0
    %1112 = vmatprep.mubr.f32.mxu0 0.0
    %1113 = vmatmul.mubr.f32.gmra.mxu0 %v545
    %v1114 = vpop.f32.mrf.mxu0
    %v1115 = vadd.f32 %v1031, %v1114
    %v1116 = vpop.f32.mrf.mxu0
    %1117 = vmatprep.mubr.f32.mxu0 0.0
    %1118 = vmatmul.mubr.f32.gmra.mxu0 %v641
    %v1119 = vpop.f32.mrf.mxu0
    %v1120 = vadd.f32 %v1031, %v1119
    %v1121 = vpop.f32.mrf.mxu0
    %1122 = vmatprep.mubr.f32.mxu0 0.0
    %1123 = vmatmul.mubr.f32.gmra.mxu0 %v737
    %v1124 = vpop.f32.mrf.mxu0
    %v1125 = vadd.f32 %v1031, %v1124
    %v1126 = vpop.f32.mrf.mxu0
    %1127 = vmatprep.mubr.f32.mxu0 0.0
    %1128 = vmatmul.mubr.f32.gmra.mxu0 %v833
    %v1129 = vpop.f32.mrf.mxu0
    %v1130 = vadd.f32 %v1031, %v1129
    %v1131 = vpop.f32.mrf.mxu0
    %1132 = vmatprep.mubr.f32.mxu0 0.0
    %1133 = vmatmul.mubr.f32.gmra.mxu0 %v929
    %v1134 = vpop.f32.mrf.mxu0
    %v1135 = vadd.f32 %v1031, %v1134
    %v1136 = vpop.f32.mrf.mxu0
    %1137 = vmatprep.mubr.f32.mxu0 0.0
    %1138 = vmatmul.mubr.f32.gmra.mxu0 %v1036
    %v1139 = vpop.f32.mrf.mxu0
    %v1140 = vadd.f32 %v1031, %v1139
    %v1141 = vpop.f32.mrf.mxu0
    %1142 = vdwg.mxu0
    %v1143 = vtanh.pop %v1105
    %v1144 = vtanh.pop %v1110
    %v1145 = vtanh.pop %v1115
    %v1146 = vtanh.pop %v1120
    %v1147 = vtanh.pop %v1125
    %v1148 = vtanh.pop %v1130
    %v1149 = vtanh.pop %v1135
    %v1150 = vtanh.pop %v1140
    %v1151 = vld [vmem:[#allocation7] sm:$0xf]
    %v1152 = vld [vmem:[#allocation8] sm:$0x1]
    %v1154 = vlaneseq
    %v1155 = vshrl.u32 %v1154, 7
    %v1156 = vsub.s32 0, %v1155
    %v1157 = vrot.slane %v1152, %v1156
    %1159 = vrot.lane.b32.xlu0 %v95, 126
    %v1160 = vpop.permute.xlu0 %1159
    %vm1161 = vcmask 31744
    %v1162 = vsel %vm1161, %v1160, 0
    %v1165 = vsel %vm141, %v1151, 0
    %1167 = vmatprep.subr.mxu0 0.0
    %1168 = vmatpush1.msra.mxu0 0.0
    %1169 = vmatprep.subr.mxu0 0.0
    %1170 = vmatpush1.msra.mxu0 0.0
    %1171 = vmatprep.subr.mxu0 0.0
    %1172 = vmatpush1.msra.mxu0 0.0
    %1173 = vmatprep.subr.mxu0 0.0
    %1174 = vmatpush1.msra.mxu0 0.0
    %1175 = vmatprep.subr.mxu0 0.0
    %1176 = vmatpush1.msra.mxu0 0.0
    %1177 = vmatprep.subr.mxu0 0.0
    %1178 = vmatpush1.msra.mxu0 0.0
    %1179 = vmatprep.subr.mxu0 0.0
    %1180 = vmatpush1.msra.mxu0 0.0
    %1181 = vmatprep.subr.mxu0 0.0
    %1182 = vmatpush1.msra.mxu0 0.0
    %1183 = vmatprep.subr.mxu0 0.0
    %1184 = vmatpush1.msra.mxu0 0.0
    %1185 = vmatprep.subr.mxu0 0.0
    %1186 = vmatpush1.msra.mxu0 0.0
    %1187 = vmatprep.subr.mxu0 0.0
    %1188 = vmatpush1.msra.mxu0 0.0
    %1189 = vmatprep.subr.mxu0 0.0
    %1190 = vmatpush1.msra.mxu0 0.0
    %1191 = vmatprep.subr.mxu0 0.0
    %1192 = vmatpush1.msra.mxu0 0.0
    %1193 = vmatprep.subr.mxu0 0.0
    %1194 = vmatpush1.msra.mxu0 0.0
    %1195 = vmatprep.subr.mxu0 0.0
    %1196 = vmatpush1.msra.mxu0 0.0
    %1197 = vmatprep.subr.mxu0 0.0
    %1198 = vmatpush1.msra.mxu0 %v1165
    %1199 = vmatprep.subr.mxu0 0.0
    %1200 = vmatpush2.msra.mxu0 0.0
    %1201 = vmatprep.subr.mxu0 0.0
    %1202 = vmatpush2.msra.mxu0 0.0
    %1203 = vmatprep.subr.mxu0 0.0
    %1204 = vmatpush2.msra.mxu0 0.0
    %1205 = vmatprep.subr.mxu0 0.0
    %1206 = vmatpush2.msra.mxu0 0.0
    %1207 = vmatprep.subr.mxu0 0.0
    %1208 = vmatpush2.msra.mxu0 0.0
    %1209 = vmatprep.subr.mxu0 0.0
    %1210 = vmatpush2.msra.mxu0 0.0
    %1211 = vmatprep.subr.mxu0 0.0
    %1212 = vmatpush2.msra.mxu0 0.0
    %1213 = vmatprep.subr.mxu0 0.0
    %1214 = vmatpush2.msra.mxu0 0.0
    %1215 = vmatprep.subr.mxu0 0.0
    %1216 = vmatpush2.msra.mxu0 0.0
    %1217 = vmatprep.subr.mxu0 0.0
    %1218 = vmatpush2.msra.mxu0 0.0
    %1219 = vmatprep.subr.mxu0 0.0
    %1220 = vmatpush2.msra.mxu0 0.0
    %1221 = vmatprep.subr.mxu0 0.0
    %1222 = vmatpush2.msra.mxu0 0.0
    %1223 = vmatprep.subr.mxu0 0.0
    %1224 = vmatpush2.msra.mxu0 0.0
    %1225 = vmatprep.subr.mxu0 0.0
    %1226 = vmatpush2.msra.mxu0 0.0
    %1227 = vmatprep.subr.mxu0 0.0
    %1228 = vmatpush2.msra.mxu0 0.0
    %1229 = vmatprep.subr.mxu0 0.0
    %1230 = vmatpush2.msra.mxu0 0.0
    %1231 = vmatprep.mubr.f32.mxu0 0.0
    %1232 = vmatmul.mubr.f32.gmra.mxu0 %v1162
    %v1233 = vpop.f32.mrf.mxu0
    %v1234 = vadd.f32 %v1157, %v1233
    %v1235 = vpop.f32.mrf.mxu0
    %1236 = vdwg.mxu0
    %v1237 = vtanh.pop %v1234
    %v1238 = vld [vmem:[%s8] sm:$0xff]
    %v1239 = vld [vmem:[%s8 + $0x8] sm:$0xff]
    %v1240 = vld [vmem:[%s9] sm:$0x1]
    %v1242 = vlaneseq
    %v1243 = vshrl.u32 %v1242, 7
    %v1244 = vsub.s32 0, %v1243
    %v1245 = vrot.slane %v1240, %v1244
    %vm1247 = vcmask 130048
    %v1249 = vsel %vm1247, %v1237, 0
    %1251 = vmatprep.subr.mxu0 0.0
    %1252 = vmatpush1.msra.mxu0 0.0
    %1253 = vmatprep.subr.mxu0 0.0
    %1254 = vmatpush1.msra.mxu0 0.0
    %1255 = vmatprep.subr.mxu0 0.0
    %1256 = vmatpush1.msra.mxu0 0.0
    %1257 = vmatprep.subr.mxu0 0.0
    %1258 = vmatpush1.msra.mxu0 0.0
    %1259 = vmatprep.subr.mxu0 0.0
    %1260 = vmatpush1.msra.mxu0 0.0
    %1261 = vmatprep.subr.mxu0 0.0
    %1262 = vmatpush1.msra.mxu0 0.0
    %1263 = vmatprep.subr.mxu0 0.0
    %1264 = vmatpush1.msra.mxu0 0.0
    %1265 = vmatprep.subr.mxu0 0.0
    %1266 = vmatpush1.msra.mxu0 0.0
    %1267 = vmatprep.subr.mxu0 0.0
    %1268 = vmatpush1.msra.mxu0 0.0
    %1269 = vmatprep.subr.mxu0 0.0
    %1270 = vmatpush1.msra.mxu0 0.0
    %1271 = vmatprep.subr.mxu0 0.0
    %1272 = vmatpush1.msra.mxu0 0.0
    %1273 = vmatprep.subr.mxu0 0.0
    %1274 = vmatpush1.msra.mxu0 0.0
    %1275 = vmatprep.subr.mxu0 0.0
    %1276 = vmatpush1.msra.mxu0 0.0
    %1277 = vmatprep.subr.mxu0 0.0
    %1278 = vmatpush1.msra.mxu0 0.0
    %1279 = vmatprep.subr.mxu0 0.0
    %1280 = vmatpush1.msra.mxu0 %v1239
    %1281 = vmatprep.subr.mxu0 0.0
    %1282 = vmatpush1.msra.mxu0 %v1238
    %1283 = vmatprep.subr.mxu0 0.0
    %1284 = vmatpush2.msra.mxu0 0.0
    %1285 = vmatprep.subr.mxu0 0.0
    %1286 = vmatpush2.msra.mxu0 0.0
    %1287 = vmatprep.subr.mxu0 0.0
    %1288 = vmatpush2.msra.mxu0 0.0
    %1289 = vmatprep.subr.mxu0 0.0
    %1290 = vmatpush2.msra.mxu0 0.0
    %1291 = vmatprep.subr.mxu0 0.0
    %1292 = vmatpush2.msra.mxu0 0.0
    %1293 = vmatprep.subr.mxu0 0.0
    %1294 = vmatpush2.msra.mxu0 0.0
    %1295 = vmatprep.subr.mxu0 0.0
    %1296 = vmatpush2.msra.mxu0 0.0
    %1297 = vmatprep.subr.mxu0 0.0
    %1298 = vmatpush2.msra.mxu0 0.0
    %1299 = vmatprep.subr.mxu0 0.0
    %1300 = vmatpush2.msra.mxu0 0.0
    %1301 = vmatprep.subr.mxu0 0.0
    %1302 = vmatpush2.msra.mxu0 0.0
    %1303 = vmatprep.subr.mxu0 0.0
    %1304 = vmatpush2.msra.mxu0 0.0
    %1305 = vmatprep.subr.mxu0 0.0
    %1306 = vmatpush2.msra.mxu0 0.0
    %1307 = vmatprep.subr.mxu0 0.0
    %1308 = vmatpush2.msra.mxu0 0.0
    %1309 = vmatprep.subr.mxu0 0.0
    %1310 = vmatpush2.msra.mxu0 0.0
    %1311 = vmatprep.subr.mxu0 0.0
    %1312 = vmatpush2.msra.mxu0 0.0
    %1313 = vmatprep.subr.mxu0 0.0
    %1314 = vmatpush2.msra.mxu0 0.0
    %1315 = vmatprep.mubr.f32.mxu0 0.0
    %1316 = vmatmul.mubr.f32.gmra.mxu0 %v1249
    %v1317 = vpop.f32.mrf.mxu0
    %v1318 = vadd.f32 %v1245, %v1317
    %v1319 = vpop.f32.mrf.mxu0
    %1320 = vdwg.mxu0
    %v1321 = vtanh.pop %v1318
    %v1322 = vld [vmem:[%s10] sm:$0xff]
    %v1323 = vld [vmem:[%s10 + $0x8] sm:$0xff]
    %v1324 = vld [vmem:[%s10 + $0x10] sm:$0xff]
    %v1325 = vld [vmem:[%s10 + $0x18] sm:$0xff]
    %v1326 = vld [vmem:[%s10 + $0x20] sm:$0xff]
    %v1327 = vld [vmem:[%s10 + $0x28] sm:$0xff]
    %v1328 = vld [vmem:[%s10 + $0x30] sm:$0xff]
    %v1329 = vld [vmem:[%s10 + $0x38] sm:$0xff]
    %v1330 = vld [vmem:[%s11] sm:$0x1]
    %v1332 = vlaneseq
    %v1333 = vshrl.u32 %v1332, 7
    %v1334 = vsub.s32 0, %v1333
    %v1335 = vrot.slane %v1330, %v1334
    %vm1337 = vcmask 523264
    %v1339 = vsel %vm1337, %v1321, 0
    %1341 = vmatprep.subr.mxu0 0.0
    %1342 = vmatpush1.msra.mxu0 0.0
    %1343 = vmatprep.subr.mxu0 0.0
    %1344 = vmatpush1.msra.mxu0 0.0
    %1345 = vmatprep.subr.mxu0 0.0
    %1346 = vmatpush1.msra.mxu0 0.0
    %1347 = vmatprep.subr.mxu0 0.0
    %1348 = vmatpush1.msra.mxu0 0.0
    %1349 = vmatprep.subr.mxu0 0.0
    %1350 = vmatpush1.msra.mxu0 0.0
    %1351 = vmatprep.subr.mxu0 0.0
    %1352 = vmatpush1.msra.mxu0 0.0
    %1353 = vmatprep.subr.mxu0 0.0
    %1354 = vmatpush1.msra.mxu0 0.0
    %1355 = vmatprep.subr.mxu0 0.0
    %1356 = vmatpush1.msra.mxu0 0.0
    %1357 = vmatprep.subr.mxu0 0.0
    %1358 = vmatpush1.msra.mxu0 %v1329
    %1359 = vmatprep.subr.mxu0 0.0
    %1360 = vmatpush1.msra.mxu0 %v1328
    %1361 = vmatprep.subr.mxu0 0.0
    %1362 = vmatpush1.msra.mxu0 %v1327
    %1363 = vmatprep.subr.mxu0 0.0
    %1364 = vmatpush1.msra.mxu0 %v1326
    %1365 = vmatprep.subr.mxu0 0.0
    %1366 = vmatpush1.msra.mxu0 %v1325
    %1367 = vmatprep.subr.mxu0 0.0
    %1368 = vmatpush1.msra.mxu0 %v1324
    %1369 = vmatprep.subr.mxu0 0.0
    %1370 = vmatpush1.msra.mxu0 %v1323
    %1371 = vmatprep.subr.mxu0 0.0
    %1372 = vmatpush1.msra.mxu0 %v1322
    %1373 = vmatprep.subr.mxu0 0.0
    %1374 = vmatpush2.msra.mxu0 0.0
    %1375 = vmatprep.subr.mxu0 0.0
    %1376 = vmatpush2.msra.mxu0 0.0
    %1377 = vmatprep.subr.mxu0 0.0
    %1378 = vmatpush2.msra.mxu0 0.0
    %1379 = vmatprep.subr.mxu0 0.0
    %1380 = vmatpush2.msra.mxu0 0.0
    %1381 = vmatprep.subr.mxu0 0.0
    %1382 = vmatpush2.msra.mxu0 0.0
    %1383 = vmatprep.subr.mxu0 0.0
    %1384 = vmatpush2.msra.mxu0 0.0
    %1385 = vmatprep.subr.mxu0 0.0
    %1386 = vmatpush2.msra.mxu0 0.0
    %1387 = vmatprep.subr.mxu0 0.0
    %1388 = vmatpush2.msra.mxu0 0.0
    %1389 = vmatprep.subr.mxu0 0.0
    %1390 = vmatpush2.msra.mxu0 0.0
    %1391 = vmatprep.subr.mxu0 0.0
    %1392 = vmatpush2.msra.mxu0 0.0
    %1393 = vmatprep.subr.mxu0 0.0
    %1394 = vmatpush2.msra.mxu0 0.0
    %1395 = vmatprep.subr.mxu0 0.0
    %1396 = vmatpush2.msra.mxu0 0.0
    %1397 = vmatprep.subr.mxu0 0.0
    %1398 = vmatpush2.msra.mxu0 0.0
    %1399 = vmatprep.subr.mxu0 0.0
    %1400 = vmatpush2.msra.mxu0 0.0
    %1401 = vmatprep.subr.mxu0 0.0
    %1402 = vmatpush2.msra.mxu0 0.0
    %1403 = vmatprep.subr.mxu0 0.0
    %1404 = vmatpush2.msra.mxu0 0.0
    %1405 = vmatprep.mubr.f32.mxu0 0.0
    %1406 = vmatmul.mubr.f32.gmra.mxu0 %v1339
    %v1407 = vpop.f32.mrf.mxu0
    %v1408 = vadd.f32 %v1335, %v1407
    %v1409 = vpop.f32.mrf.mxu0
    %1410 = vdwg.mxu0
    %v1411 = vtanh.pop %v1408
    %v1412 = vld [vmem:[%s12] sm:$0xff]
    %v1413 = vld [vmem:[%s12 + $0x8] sm:$0xff]
    %v1414 = vld [vmem:[%s13] sm:$0x1]
    %v1416 = vlaneseq
    %v1417 = vshrl.u32 %v1416, 7
    %v1418 = vsub.s32 0, %v1417
    %v1419 = vrot.slane %v1414, %v1418
    %v1422 = vsel %vm1247, %v1411, 0
    %1424 = vmatprep.subr.mxu0 0.0
    %1425 = vmatpush1.msra.mxu0 0.0
    %1426 = vmatprep.subr.mxu0 0.0
    %1427 = vmatpush1.msra.mxu0 0.0
    %1428 = vmatprep.subr.mxu0 0.0
    %1429 = vmatpush1.msra.mxu0 0.0
    %1430 = vmatprep.subr.mxu0 0.0
    %1431 = vmatpush1.msra.mxu0 0.0
    %1432 = vmatprep.subr.mxu0 0.0
    %1433 = vmatpush1.msra.mxu0 0.0
    %1434 = vmatprep.subr.mxu0 0.0
    %1435 = vmatpush1.msra.mxu0 0.0
    %1436 = vmatprep.subr.mxu0 0.0
    %1437 = vmatpush1.msra.mxu0 0.0
    %1438 = vmatprep.subr.mxu0 0.0
    %1439 = vmatpush1.msra.mxu0 0.0
    %1440 = vmatprep.subr.mxu0 0.0
    %1441 = vmatpush1.msra.mxu0 0.0
    %1442 = vmatprep.subr.mxu0 0.0
    %1443 = vmatpush1.msra.mxu0 0.0
    %1444 = vmatprep.subr.mxu0 0.0
    %1445 = vmatpush1.msra.mxu0 0.0
    %1446 = vmatprep.subr.mxu0 0.0
    %1447 = vmatpush1.msra.mxu0 0.0
    %1448 = vmatprep.subr.mxu0 0.0
    %1449 = vmatpush1.msra.mxu0 0.0
    %1450 = vmatprep.subr.mxu0 0.0
    %1451 = vmatpush1.msra.mxu0 0.0
    %1452 = vmatprep.subr.mxu0 0.0
    %1453 = vmatpush1.msra.mxu0 %v1413
    %1454 = vmatprep.subr.mxu0 0.0
    %1455 = vmatpush1.msra.mxu0 %v1412
    %1456 = vmatprep.subr.mxu0 0.0
    %1457 = vmatpush2.msra.mxu0 0.0
    %1458 = vmatprep.subr.mxu0 0.0
    %1459 = vmatpush2.msra.mxu0 0.0
    %1460 = vmatprep.subr.mxu0 0.0
    %1461 = vmatpush2.msra.mxu0 0.0
    %1462 = vmatprep.subr.mxu0 0.0
    %1463 = vmatpush2.msra.mxu0 0.0
    %1464 = vmatprep.subr.mxu0 0.0
    %1465 = vmatpush2.msra.mxu0 0.0
    %1466 = vmatprep.subr.mxu0 0.0
    %1467 = vmatpush2.msra.mxu0 0.0
    %1468 = vmatprep.subr.mxu0 0.0
    %1469 = vmatpush2.msra.mxu0 0.0
    %1470 = vmatprep.subr.mxu0 0.0
    %1471 = vmatpush2.msra.mxu0 0.0
    %1472 = vmatprep.subr.mxu0 0.0
    %1473 = vmatpush2.msra.mxu0 0.0
    %1474 = vmatprep.subr.mxu0 0.0
    %1475 = vmatpush2.msra.mxu0 0.0
    %1476 = vmatprep.subr.mxu0 0.0
    %1477 = vmatpush2.msra.mxu0 0.0
    %1478 = vmatprep.subr.mxu0 0.0
    %1479 = vmatpush2.msra.mxu0 0.0
    %1480 = vmatprep.subr.mxu0 0.0
    %1481 = vmatpush2.msra.mxu0 0.0
    %1482 = vmatprep.subr.mxu0 0.0
    %1483 = vmatpush2.msra.mxu0 0.0
    %1484 = vmatprep.subr.mxu0 0.0
    %1485 = vmatpush2.msra.mxu0 0.0
    %1486 = vmatprep.subr.mxu0 0.0
    %1487 = vmatpush2.msra.mxu0 0.0
    %1488 = vmatprep.mubr.f32.mxu0 0.0
    %1489 = vmatmul.mubr.f32.gmra.mxu0 %v1422
    %v1490 = vpop.f32.mrf.mxu0
    %v1491 = vadd.f32 %v1419, %v1490
    %v1492 = vpop.f32.mrf.mxu0
    %1493 = vdwg.mxu0
    %v1494 = vtanh.pop %v1491
    %1496 = vrot.lane.b32.xlu0 %v1494, 2
    %v1497 = vpop.permute.xlu0 %1496
    %1507 = vrot.lane.b32.xlu0 %v1143, 6
    %v1508 = vpop.permute.xlu0 %1507
    %1509 = vrot.lane.b32.xlu0 %v1144, 6
    %v1510 = vpop.permute.xlu0 %1509
    %1511 = vrot.lane.b32.xlu0 %v1145, 6
    %v1512 = vpop.permute.xlu0 %1511
    %1513 = vrot.lane.b32.xlu0 %v1146, 6
    %v1514 = vpop.permute.xlu0 %1513
    %1515 = vrot.lane.b32.xlu0 %v1147, 6
    %v1516 = vpop.permute.xlu0 %1515
    %1517 = vrot.lane.b32.xlu0 %v1148, 6
    %v1518 = vpop.permute.xlu0 %1517
    %1519 = vrot.lane.b32.xlu0 %v1149, 6
    %v1520 = vpop.permute.xlu0 %1519
    %1521 = vrot.lane.b32.xlu0 %v1150, 6
    %v1522 = vpop.permute.xlu0 %1521
    %vm1531 = vcmask 15360
    %v1532 = vsel %vm1531, %v95, %v1497
    %v1533 = vsel %vm1531, %v96, %v1497
    %v1534 = vsel %vm1531, %v97, %v1497
    %v1535 = vsel %vm1531, %v98, %v1497
    %v1536 = vsel %vm1531, %v99, %v1497
    %v1537 = vsel %vm1531, %v100, %v1497
    %v1538 = vsel %vm1531, %v101, %v1497
    %v1539 = vsel %vm1531, %v102, %v1497
    %vm1540 = vcmask 48128
    %v1541 = vsel %vm1540, %v1532, %v1508
    %v1542 = vsel %vm1540, %v1533, %v1510
    %v1543 = vsel %vm1540, %v1534, %v1512
    %v1544 = vsel %vm1540, %v1535, %v1514
    %v1545 = vsel %vm1540, %v1536, %v1516
    %v1546 = vsel %vm1540, %v1537, %v1518
    %v1547 = vsel %vm1540, %v1538, %v1520
    %v1548 = vsel %vm1540, %v1539, %v1522
    %vm1549 = vcmask 80896
    %v1550 = vsel %vm1549, %v1541, 0.0
    %v1551 = vsel %vm1549, %v1542, 0.0
    %v1552 = vsel %vm1549, %v1543, 0.0
    %v1553 = vsel %vm1549, %v1544, 0.0
    %v1554 = vsel %vm1549, %v1545, 0.0
    %v1555 = vsel %vm1549, %v1546, 0.0
    %v1556 = vsel %vm1549, %v1547, 0.0
    %v1557 = vsel %vm1549, %v1548, 0.0
    %1558 = vst [vmem:[#allocation10] sm:$0xff] %v1550
    %1559 = vst [vmem:[#allocation10 + $0x8] sm:$0xff] %v1551
    %1560 = vst [vmem:[#allocation10 + $0x10] sm:$0xff] %v1552
    %1561 = vst [vmem:[#allocation10 + $0x18] sm:$0xff] %v1553
    %1562 = vst [vmem:[#allocation10 + $0x20] sm:$0xff] %v1554
    %1563 = vst [vmem:[#allocation10 + $0x28] sm:$0xff] %v1555
    %1564 = vst [vmem:[#allocation10 + $0x30] sm:$0xff] %v1556
    %1565 = vst [vmem:[#allocation10 + $0x38] sm:$0xff] %v1557
    // Predicated region
    $region74: #{tpu_custom_call.1} parent=1 // pred_check
      _
    $region75: #{tpu_custom_call.1} parent=1 // pred_check_branch
      %1567 = sbr.rel (0) target = $region77
    $region76: #{tpu_custom_call.1} parent=1 // pred_region
      %s1569 = ssub.s32 1024, 1024
      %1570 = vsyncadd [#allocation4], %s1569
      %s1571 = sshll.u32 [#allocation10], 4
      %s1572 = int_to_ptr.vmem [resolvable:$true] %s1571
      %1577 = dma.vmem_to_hbm [thread:$0]  %s1572, 1024, %s14, [#allocation4], 128, 128, 8
    $region77: #{tpu_custom_call.1} parent=1 // pred_fallthru
      _
    // Predicated region
    $region78: #{tpu_custom_call.1} parent=1 // pred_check
      _
    $region79: #{tpu_custom_call.1} parent=1 // pred_check_branch
      %1579 = sbr.rel (0) target = $region81
    $region80: #{tpu_custom_call.1} parent=1 // pred_region
      %1580 = dma.done [#allocation4], 1024
    $region81: #{tpu_custom_call.1} parent=1 // pred_fallthru
      _
    %1581 = vsyncpa [#allocation3], 1
    %1582 = vsyncpa [#allocation6], 1
    %1583 = vsyncpa [#allocation9], 1
    %1584 = vsyncpa [#allocation4], 1

</llo_original>
